<compile_context>
chip_gen: v5e
topology: v5e:2x2
jax: 0.10.0
libtpu: 0.0.40
codegen_flags: <defaults>
</compile_context>

<pallas_src>
import functools

import jax
import jax.numpy as jnp
import numpy as np
from jax.experimental import pallas as pl
from jax.experimental.pallas import tpu as pltpu

BN_EPS = 1e-5
LANE = 128
_VMEM_LIMIT = 48 * 1024 * 1024  # explicit scoped-VMEM budget (fits v5e/v6e/v7x)


def _round_up(x, m):
    return (x + m - 1) // m * m


# --------------------------------------------------------------------------
# Phase 1: 3x3 conv (9 shifted matmuls) + global BN sum / sum-of-squares
# --------------------------------------------------------------------------
def conv3x3_stats_kernel(x0_ref, x1_ref, x2_ref, w1_ref, y_ref, sum_ref, sq_ref):
    # x{d}_ref : (1, 1, W+2, Cp) bf16  -- padded input row (h + d) of image b
    # w1_ref   : (9, Cp, Cp)     bf16  -- 3x3 weights, tap-major (dh*3 + dw), resident
    # y_ref    : (1, 1, W, Cp)   f32   -- conv output row for this grid step
    # sum_ref  : (1, Cp)         f32   -- global per-channel sum  (resident accumulator)
    # sq_ref   : (1, Cp)         f32   -- global per-channel sumsq (resident accumulator)
    b = pl.program_id(0)
    h = pl.program_id(1)
    w_out = y_ref.shape[2]
    cp = y_ref.shape[3]

    rows = (x0_ref[0, 0], x1_ref[0, 0], x2_ref[0, 0])  # each (W+2, Cp) bf16
    acc = jnp.zeros((w_out, cp), jnp.float32)
    for dh in range(3):
        xr = rows[dh]
        for dw in range(3):
            # shifted window along W (static sublane slice) -> MXU, f32 accumulation
            acc += jnp.dot(xr[dw:dw + w_out, :], w1_ref[dh * 3 + dw],
                           preferred_element_type=jnp.float32)
    y_ref[0, 0] = acc

    @pl.when(jnp.logical_and(b == 0, h == 0))
    def _():
        sum_ref[...] = jnp.zeros_like(sum_ref)
        sq_ref[...] = jnp.zeros_like(sq_ref)

    sum_ref[...] += jnp.sum(acc, axis=0, keepdims=True)
    sq_ref[...] += jnp.sum(acc * acc, axis=0, keepdims=True)


# --------------------------------------------------------------------------
# Phase 2: BatchNorm (global batch stats) + ReLU + 1x1 conv, row-tiled
# --------------------------------------------------------------------------
def bn_relu_proj_kernel(y_ref, sum_ref, sq_ref, gamma_ref, beta_ref, w2_ref,
                        o_ref, *, inv_n, eps):
    # y_ref : (TN, Cp) f32   sum/sq/gamma/beta : (1, Cp) f32   w2_ref : (Cp, NCp) bf16
    mean = sum_ref[...] * inv_n
    var = sq_ref[...] * inv_n - mean * mean          # biased (training-mode) variance
    scale = gamma_ref[...] * jax.lax.rsqrt(var + eps)
    shift = beta_ref[...] - mean * scale
    h = jnp.maximum(y_ref[...] * scale + shift, 0.0)  # BN + ReLU in f32
    o_ref[...] = jnp.dot(h.astype(jnp.bfloat16), w2_ref[...],
                         preferred_element_type=jnp.float32)


# --------------------------------------------------------------------------
# Wrapper
# --------------------------------------------------------------------------
def out_conv_forward(x_nchw, w_conv1, bn_gamma, bn_beta, w_conv2, *, row_tile=256):
    """x_nchw: (B, C, H, W); w_conv1: (C, C, 3, 3); w_conv2: (n_class, C, 1, 1)."""
    B, C, H, W = x_nchw.shape
    n_class = w_conv2.shape[0]
    Cp = _round_up(C, LANE)        # lane-pad channels (real EMANet C=512 is a no-op)
    NCp = _round_up(n_class, LANE)  # lane-dense output (full-width vst), sliced later

    # Glue: NCHW -> NHWC bf16, zero-pad spatial ring + channel padding.
    x_nhwc = jnp.transpose(x_nchw, (0, 2, 3, 1)).astype(jnp.bfloat16)
    xp = jnp.pad(x_nhwc, ((0, 0), (1, 1), (1, 1), (0, Cp - C)))        # (B, H+2, W+2, Cp)

    # Glue: weights -> lane-padded bf16 matmul operands.
    w1 = jnp.transpose(w_conv1, (2, 3, 1, 0))                           # (3, 3, Cin, Cout)
    w1 = jnp.pad(w1, ((0, 0), (0, 0), (0, Cp - C), (0, Cp - C)))
    w1 = w1.reshape(9, Cp, Cp).astype(jnp.bfloat16)
    w2 = jnp.transpose(w_conv2[:, :, 0, 0], (1, 0))                     # (C, n_class)
    w2 = jnp.pad(w2, ((0, Cp - C), (0, NCp - n_class))).astype(jnp.bfloat16)
    gamma = jnp.pad(bn_gamma.astype(jnp.float32), (0, Cp - C)).reshape(1, Cp)
    beta = jnp.pad(bn_beta.astype(jnp.float32), (0, Cp - C)).reshape(1, Cp)

    # ---------------- phase 1: conv + stats, grid over (batch, image row) ----------------
    # The same padded array is passed three times with row offsets 0/1/2, so the
    # 3x3 halo is assembled from a 1x HBM copy (no im2col inflation).
    def xrow_spec(dh):
        return pl.BlockSpec((1, 1, W + 2, Cp),
                            lambda b, h, dh=dh: (b, h + dh, 0, 0))

    y, csum, csq = pl.pallas_call(
        conv3x3_stats_kernel,
        out_shape=(jax.ShapeDtypeStruct((B, H, W, Cp), jnp.float32),
                   jax.ShapeDtypeStruct((1, Cp), jnp.float32),
                   jax.ShapeDtypeStruct((1, Cp), jnp.float32)),
        grid_spec=pltpu.PrefetchScalarGridSpec(
            num_scalar_prefetch=0,
            grid=(B, H),
            in_specs=[xrow_spec(0), xrow_spec(1), xrow_spec(2),
                      pl.BlockSpec((9, Cp, Cp), lambda b, h: (0, 0, 0))],   # resident
            out_specs=(pl.BlockSpec((1, 1, W, Cp), lambda b, h: (b, h, 0, 0)),
                       pl.BlockSpec((1, Cp), lambda b, h: (0, 0)),          # accumulator
                       pl.BlockSpec((1, Cp), lambda b, h: (0, 0)))),        # accumulator
        compiler_params=pltpu.CompilerParams(
            # Stats accumulation is a global reduction -> sequential axes.
            # (On v7x one could use per-core partial accumulators for 2-TC overlap.)
            dimension_semantics=("arbitrary", "arbitrary"),
            vmem_limit_bytes=_VMEM_LIMIT),
    )(xp, xp, xp, w1)

    # ---------------- phase 2: BN + ReLU + 1x1 conv, parallel row tiles ----------------
    # y (N x Cp f32) is spilled to HBM; for very large C an MXU-bound variant would
    # instead recompute the 3x3 conv here (size-dependent switch).
    N = B * H * W
    tn = row_tile
    while tn > 8 and N % tn != 0:
        tn //= 2
    if N % tn != 0:
        tn = N
    y2 = y.reshape(N, Cp)

    kernel2 = functools.partial(bn_relu_proj_kernel, inv_n=1.0 / N, eps=BN_EPS)
    out_pad = pl.pallas_call(
        kernel2,
        out_shape=jax.ShapeDtypeStruct((N, NCp), jnp.float32),
        grid_spec=pltpu.PrefetchScalarGridSpec(
            num_scalar_prefetch=0,
            grid=(N // tn,),
            in_specs=[pl.BlockSpec((tn, Cp), lambda i: (i, 0)),
                      pl.BlockSpec((1, Cp), lambda i: (0, 0)),     # sum    (resident)
                      pl.BlockSpec((1, Cp), lambda i: (0, 0)),     # sumsq  (resident)
                      pl.BlockSpec((1, Cp), lambda i: (0, 0)),     # gamma  (resident)
                      pl.BlockSpec((1, Cp), lambda i: (0, 0)),     # beta   (resident)
                      pl.BlockSpec((Cp, NCp), lambda i: (0, 0))],  # w2     (resident)
            out_specs=pl.BlockSpec((tn, NCp), lambda i: (i, 0))),
        compiler_params=pltpu.CompilerParams(
            dimension_semantics=("parallel",),   # shards across TCs on v7x
            vmem_limit_bytes=_VMEM_LIMIT),
    )(y2, csum, csq, gamma, beta, w2)

    # Glue: strip lane padding, back to NCHW.
    out = out_pad.reshape(B, H, W, NCp)[:, :, :, :n_class]
    return jnp.transpose(out, (0, 3, 1, 2))


# --------------------------------------------------------------------------
# Pure-JAX reference (NCHW).  Conv inputs are rounded to bf16 (f32 accumulation),
# mirroring how the Pallas kernel feeds the MXU; BN stats / normalization stay f32.
# --------------------------------------------------------------------------
def reference_forward(x, w_conv1, gamma, beta, w_conv2):
    f32 = jnp.float32
    q = lambda a: a.astype(jnp.bfloat16).astype(f32)
    y = jax.lax.conv_general_dilated(
        q(x), q(w_conv1), (1, 1), ((1, 1), (1, 1)),
        dimension_numbers=("NCHW", "OIHW", "NCHW"),
        precision=jax.lax.Precision.HIGHEST)
    mean = jnp.mean(y, axis=(0, 2, 3), keepdims=True)
    var = jnp.mean(jnp.square(y - mean), axis=(0, 2, 3), keepdims=True)
    y = (y - mean) * jax.lax.rsqrt(var + BN_EPS)
    y = y * gamma.reshape(1, -1, 1, 1) + beta.reshape(1, -1, 1, 1)
    y = jnp.maximum(y, 0.0)
    return jax.lax.conv_general_dilated(
        q(y), q(w_conv2), (1, 1), ((0, 0), (0, 0)),
        dimension_numbers=("NCHW", "OIHW", "NCHW"),
        precision=jax.lax.Precision.HIGHEST)


if __name__ == "__main__":
    B, C, H, W, n_class = 2, 4, 16, 16, 3

    key = jax.random.PRNGKey(0)
    k_x, k_w1, k_w2, k_g = jax.random.split(key, 4)

    x = jax.random.normal(k_x, (B, C, H, W), dtype=jnp.float32)
    # Deterministic "kaiming" init (fan_in mode, ReLU gain)
    std1 = float(np.sqrt(2.0 / (C * 3 * 3)))
    w_conv1 = std1 * jax.random.normal(k_w1, (C, C, 3, 3), dtype=jnp.float32)
    std2 = float(np.sqrt(2.0 / (C * 1 * 1)))
    w_conv2 = std2 * jax.random.normal(k_w2, (n_class, C, 1, 1), dtype=jnp.float32)
    # BatchNorm init (kaiming branch for BN: weight ~ N(1, 0.02), bias = 0)
    bn_gamma = 1.0 + 0.02 * jax.random.normal(k_g, (C,), dtype=jnp.float32)
    bn_beta = jnp.zeros((C,), dtype=jnp.float32)

    fwd = jax.jit(out_conv_forward)
    out = jax.block_until_ready(fwd(x, w_conv1, bn_gamma, bn_beta, w_conv2))
    ref = jax.block_until_ready(
        reference_forward(x, w_conv1, bn_gamma, bn_beta, w_conv2))

    assert out.shape == (B, n_class, H, W)
    # Tolerance covers bf16 input rounding / accumulation-order differences only;
    # the math is otherwise identical (f32 accumulation, f32 BN statistics).
    np.testing.assert_allclose(np.asarray(out), np.asarray(ref),
                               rtol=1e-2, atol=1e-2)
    print("KERNEL_OK")
</pallas_src>

<mosaic_0001>
module attributes {stable_mosaic.version = 11 : i64} {
  func.func @bn_relu_proj_kernel(%arg0: i32, %arg1: memref<256x128xf32, #tpu.memory_space<vmem>>, %arg2: memref<1x128xf32, #tpu.memory_space<vmem>>, %arg3: memref<1x128xf32, #tpu.memory_space<vmem>>, %arg4: memref<1x128xf32, #tpu.memory_space<vmem>>, %arg5: memref<1x128xf32, #tpu.memory_space<vmem>>, %arg6: memref<128x128xbf16, #tpu.memory_space<vmem>>, %arg7: memref<256x128xf32, #tpu.memory_space<vmem>>) attributes {dimension_semantics = [#tpu.dimension_semantics<parallel>], iteration_bounds = array<i64: 2>, scalar_prefetch = 0 : i64, scratch_operands = 0 : i64, tpu.core_type = #tpu.core_type<tc>, window_params = [{transform_indices = @transform_0, window_bounds = array<i64: 256, 128>}, {pipeline_mode = #tpu.pipeline_mode<synchronous>, transform_indices = @transform_1, window_bounds = array<i64: 1, 128>}, {pipeline_mode = #tpu.pipeline_mode<synchronous>, transform_indices = @transform_2, window_bounds = array<i64: 1, 128>}, {pipeline_mode = #tpu.pipeline_mode<synchronous>, transform_indices = @transform_3, window_bounds = array<i64: 1, 128>}, {pipeline_mode = #tpu.pipeline_mode<synchronous>, transform_indices = @transform_4, window_bounds = array<i64: 1, 128>}, {pipeline_mode = #tpu.pipeline_mode<synchronous>, transform_indices = @transform_5, window_bounds = array<i64: 128, 128>}, {transform_indices = @transform_6, window_bounds = array<i64: 256, 128>}]} {
    %c0 = arith.constant 0 : index
    %c0_0 = arith.constant 0 : index
    %0 = vector.load %arg2[%c0, %c0_0] : memref<1x128xf32, #tpu.memory_space<vmem>>, vector<1x128xf32>
    %cst = arith.constant 0.001953125 : f32
    %1 = vector.broadcast %cst : f32 to vector<1x128xf32>
    %2 = arith.mulf %0, %1 : vector<1x128xf32>
    %c0_1 = arith.constant 0 : index
    %c0_2 = arith.constant 0 : index
    %3 = vector.load %arg3[%c0_1, %c0_2] : memref<1x128xf32, #tpu.memory_space<vmem>>, vector<1x128xf32>
    %cst_3 = arith.constant 0.001953125 : f32
    %4 = vector.broadcast %cst_3 : f32 to vector<1x128xf32>
    %5 = arith.mulf %3, %4 : vector<1x128xf32>
    %6 = arith.mulf %2, %2 : vector<1x128xf32>
    %7 = arith.subf %5, %6 : vector<1x128xf32>
    %c0_4 = arith.constant 0 : index
    %c0_5 = arith.constant 0 : index
    %8 = vector.load %arg4[%c0_4, %c0_5] : memref<1x128xf32, #tpu.memory_space<vmem>>, vector<1x128xf32>
    %cst_6 = arith.constant 9.99999974E-6 : f32
    %9 = vector.broadcast %cst_6 : f32 to vector<1x128xf32>
    %10 = arith.addf %7, %9 : vector<1x128xf32>
    %11 = math.rsqrt %10 : vector<1x128xf32>
    %12 = arith.mulf %8, %11 : vector<1x128xf32>
    %c0_7 = arith.constant 0 : index
    %c0_8 = arith.constant 0 : index
    %13 = vector.load %arg5[%c0_7, %c0_8] : memref<1x128xf32, #tpu.memory_space<vmem>>, vector<1x128xf32>
    %14 = arith.mulf %2, %12 : vector<1x128xf32>
    %15 = arith.subf %13, %14 : vector<1x128xf32>
    %c0_9 = arith.constant 0 : index
    %c0_10 = arith.constant 0 : index
    %16 = vector.load %arg1[%c0_9, %c0_10] : memref<256x128xf32, #tpu.memory_space<vmem>>, vector<256x128xf32>
    %17 = vector.broadcast %12 : vector<1x128xf32> to vector<256x128xf32>
    %18 = arith.mulf %16, %17 : vector<256x128xf32>
    %19 = vector.broadcast %15 : vector<1x128xf32> to vector<256x128xf32>
    %20 = arith.addf %18, %19 : vector<256x128xf32>
    %cst_11 = arith.constant 0.000000e+00 : f32
    %21 = vector.broadcast %cst_11 : f32 to vector<256x128xf32>
    %22 = arith.maximumf %20, %21 : vector<256x128xf32>
    %23 = arith.truncf %22 : vector<256x128xf32> to vector<256x128xbf16>
    %c0_12 = arith.constant 0 : index
    %c0_13 = arith.constant 0 : index
    %24 = vector.load %arg6[%c0_12, %c0_13] : memref<128x128xbf16, #tpu.memory_space<vmem>>, vector<128x128xbf16>
    %cst_14 = arith.constant dense<0.000000e+00> : vector<256x128xf32>
    %25 = tpu.matmul %23, %24, %cst_14 {dimension_numbers = #tpu.dot_dimension_numbers<[1], [0], [0], [1], [0, 0, 1, 1], [], []>} : vector<256x128xbf16>, vector<128x128xbf16>, vector<256x128xf32> -> vector<256x128xf32>
    %c0_15 = arith.constant 0 : index
    %c0_16 = arith.constant 0 : index
    %26 = vector.load %arg7[%c0_15, %c0_16] : memref<256x128xf32, #tpu.memory_space<vmem>>, vector<256x128xf32>
    tpu.vector_store %arg7[%c0_15, %c0_16], %25 {strides = array<i32>} : memref<256x128xf32, #tpu.memory_space<vmem>>, vector<256x128xf32>,
    return
  }
  func.func @transform_0(%arg0: i32) -> (i32, i32) {
    %c0_i32 = arith.constant 0 : i32
    %c0_i32_0 = arith.constant 0 : i32
    return %arg0, %c0_i32 : i32, i32
  }
  func.func @transform_1(%arg0: i32) -> (i32, i32) {
    %c0_i32 = arith.constant 0 : i32
    %c0_i32_0 = arith.constant 0 : i32
    %c0_i32_1 = arith.constant 0 : i32
    return %c0_i32, %c0_i32_0 : i32, i32
  }
  func.func @transform_2(%arg0: i32) -> (i32, i32) {
    %c0_i32 = arith.constant 0 : i32
    %c0_i32_0 = arith.constant 0 : i32
    %c0_i32_1 = arith.constant 0 : i32
    return %c0_i32, %c0_i32_0 : i32, i32
  }
  func.func @transform_3(%arg0: i32) -> (i32, i32) {
    %c0_i32 = arith.constant 0 : i32
    %c0_i32_0 = arith.constant 0 : i32
    %c0_i32_1 = arith.constant 0 : i32
    return %c0_i32, %c0_i32_0 : i32, i32
  }
  func.func @transform_4(%arg0: i32) -> (i32, i32) {
    %c0_i32 = arith.constant 0 : i32
    %c0_i32_0 = arith.constant 0 : i32
    %c0_i32_1 = arith.constant 0 : i32
    return %c0_i32, %c0_i32_0 : i32, i32
  }
  func.func @transform_5(%arg0: i32) -> (i32, i32) {
    %c0_i32 = arith.constant 0 : i32
    %c0_i32_0 = arith.constant 0 : i32
    %c0_i32_1 = arith.constant 0 : i32
    return %c0_i32, %c0_i32_0 : i32, i32
  }
  func.func @transform_6(%arg0: i32) -> (i32, i32) {
    %c0_i32 = arith.constant 0 : i32
    %c0_i32_0 = arith.constant 0 : i32
    return %arg0, %c0_i32 : i32, i32
  }
}

module attributes {stable_mosaic.version = 11 : i64} {
  func.func @conv3x3_stats_kernel(%arg0: i32, %arg1: i32, %arg2: memref<1x1x18x128xbf16, #tpu.memory_space<vmem>>, %arg3: memref<1x1x18x128xbf16, #tpu.memory_space<vmem>>, %arg4: memref<1x1x18x128xbf16, #tpu.memory_space<vmem>>, %arg5: memref<9x128x128xbf16, #tpu.memory_space<vmem>>, %arg6: memref<1x1x16x128xf32, #tpu.memory_space<vmem>>, %arg7: memref<1x128xf32, #tpu.memory_space<vmem>>, %arg8: memref<1x128xf32, #tpu.memory_space<vmem>>) attributes {dimension_semantics = [#tpu.dimension_semantics<arbitrary>, #tpu.dimension_semantics<arbitrary>], iteration_bounds = array<i64: 2, 16>, scalar_prefetch = 0 : i64, scratch_operands = 0 : i64, tpu.core_type = #tpu.core_type<tc>, window_params = [{transform_indices = @transform_0, window_bounds = array<i64: 1, 1, 18, 128>}, {transform_indices = @transform_1, window_bounds = array<i64: 1, 1, 18, 128>}, {transform_indices = @transform_2, window_bounds = array<i64: 1, 1, 18, 128>}, {pipeline_mode = #tpu.pipeline_mode<synchronous>, transform_indices = @transform_3, window_bounds = array<i64: 9, 128, 128>}, {transform_indices = @transform_4, window_bounds = array<i64: 1, 1, 16, 128>}, {pipeline_mode = #tpu.pipeline_mode<synchronous>, transform_indices = @transform_5, window_bounds = array<i64: 1, 128>}, {pipeline_mode = #tpu.pipeline_mode<synchronous>, transform_indices = @transform_6, window_bounds = array<i64: 1, 128>}]} {
    %c0 = arith.constant 0 : index
    %c0_0 = arith.constant 0 : index
    %c0_1 = arith.constant 0 : index
    %c0_2 = arith.constant 0 : index
    %0 = vector.load %arg2[%c0, %c0_0, %c0_1, %c0_2] : memref<1x1x18x128xbf16, #tpu.memory_space<vmem>>, vector<1x1x18x128xbf16>
    %1 = vector.shape_cast %0 : vector<1x1x18x128xbf16> to vector<18x128xbf16>
    %c0_3 = arith.constant 0 : index
    %c0_4 = arith.constant 0 : index
    %c0_5 = arith.constant 0 : index
    %c0_6 = arith.constant 0 : index
    %2 = vector.load %arg3[%c0_3, %c0_4, %c0_5, %c0_6] : memref<1x1x18x128xbf16, #tpu.memory_space<vmem>>, vector<1x1x18x128xbf16>
    %3 = vector.shape_cast %2 : vector<1x1x18x128xbf16> to vector<18x128xbf16>
    %c0_7 = arith.constant 0 : index
    %c0_8 = arith.constant 0 : index
    %c0_9 = arith.constant 0 : index
    %c0_10 = arith.constant 0 : index
    %4 = vector.load %arg4[%c0_7, %c0_8, %c0_9, %c0_10] : memref<1x1x18x128xbf16, #tpu.memory_space<vmem>>, vector<1x1x18x128xbf16>
    %5 = vector.shape_cast %4 : vector<1x1x18x128xbf16> to vector<18x128xbf16>
    %cst = arith.constant 0.000000e+00 : f32
    %6 = vector.broadcast %cst : f32 to vector<16x128xf32>
    %7 = vector.extract_strided_slice %1 {offsets = [0, 0], sizes = [16, 128], strides = [1, 1]} : vector<18x128xbf16> to vector<16x128xbf16>
    %c0_11 = arith.constant 0 : index
    %c0_12 = arith.constant 0 : index
    %c0_13 = arith.constant 0 : index
    %8 = vector.load %arg5[%c0_11, %c0_12, %c0_13] : memref<9x128x128xbf16, #tpu.memory_space<vmem>>, vector<1x128x128xbf16>
    %9 = vector.shape_cast %8 : vector<1x128x128xbf16> to vector<128x128xbf16>
    %cst_14 = arith.constant dense<0.000000e+00> : vector<16x128xf32>
    %10 = tpu.matmul %7, %9, %cst_14 {dimension_numbers = #tpu.dot_dimension_numbers<[1], [0], [0], [1], [0, 0, 1, 1], [], []>} : vector<16x128xbf16>, vector<128x128xbf16>, vector<16x128xf32> -> vector<16x128xf32>
    %11 = arith.addf %6, %10 : vector<16x128xf32>
    %12 = vector.extract_strided_slice %1 {offsets = [1, 0], sizes = [16, 128], strides = [1, 1]} : vector<18x128xbf16> to vector<16x128xbf16>
    %c1 = arith.constant 1 : index
    %c0_15 = arith.constant 0 : index
    %c0_16 = arith.constant 0 : index
    %13 = vector.load %arg5[%c1, %c0_15, %c0_16] : memref<9x128x128xbf16, #tpu.memory_space<vmem>>, vector<1x128x128xbf16>
    %14 = vector.shape_cast %13 : vector<1x128x128xbf16> to vector<128x128xbf16>
    %cst_17 = arith.constant dense<0.000000e+00> : vector<16x128xf32>
    %15 = tpu.matmul %12, %14, %cst_17 {dimension_numbers = #tpu.dot_dimension_numbers<[1], [0], [0], [1], [0, 0, 1, 1], [], []>} : vector<16x128xbf16>, vector<128x128xbf16>, vector<16x128xf32> -> vector<16x128xf32>
    %16 = arith.addf %11, %15 : vector<16x128xf32>
    %17 = vector.extract_strided_slice %1 {offsets = [2, 0], sizes = [16, 128], strides = [1, 1]} : vector<18x128xbf16> to vector<16x128xbf16>
    %c2 = arith.constant 2 : index
    %c0_18 = arith.constant 0 : index
    %c0_19 = arith.constant 0 : index
    %18 = vector.load %arg5[%c2, %c0_18, %c0_19] : memref<9x128x128xbf16, #tpu.memory_space<vmem>>, vector<1x128x128xbf16>
    %19 = vector.shape_cast %18 : vector<1x128x128xbf16> to vector<128x128xbf16>
    %cst_20 = arith.constant dense<0.000000e+00> : vector<16x128xf32>
    %20 = tpu.matmul %17, %19, %cst_20 {dimension_numbers = #tpu.dot_dimension_numbers<[1], [0], [0], [1], [0, 0, 1, 1], [], []>} : vector<16x128xbf16>, vector<128x128xbf16>, vector<16x128xf32> -> vector<16x128xf32>
    %21 = arith.addf %16, %20 : vector<16x128xf32>
    %22 = vector.extract_strided_slice %3 {offsets = [0, 0], sizes = [16, 128], strides = [1, 1]} : vector<18x128xbf16> to vector<16x128xbf16>
    %c3 = arith.constant 3 : index
    %c0_21 = arith.constant 0 : index
    %c0_22 = arith.constant 0 : index
    %23 = vector.load %arg5[%c3, %c0_21, %c0_22] : memref<9x128x128xbf16, #tpu.memory_space<vmem>>, vector<1x128x128xbf16>
    %24 = vector.shape_cast %23 : vector<1x128x128xbf16> to vector<128x128xbf16>
    %cst_23 = arith.constant dense<0.000000e+00> : vector<16x128xf32>
    %25 = tpu.matmul %22, %24, %cst_23 {dimension_numbers = #tpu.dot_dimension_numbers<[1], [0], [0], [1], [0, 0, 1, 1], [], []>} : vector<16x128xbf16>, vector<128x128xbf16>, vector<16x128xf32> -> vector<16x128xf32>
    %26 = arith.addf %21, %25 : vector<16x128xf32>
    %27 = vector.extract_strided_slice %3 {offsets = [1, 0], sizes = [16, 128], strides = [1, 1]} : vector<18x128xbf16> to vector<16x128xbf16>
    %c4 = arith.constant 4 : index
    %c0_24 = arith.constant 0 : index
    %c0_25 = arith.constant 0 : index
    %28 = vector.load %arg5[%c4, %c0_24, %c0_25] : memref<9x128x128xbf16, #tpu.memory_space<vmem>>, vector<1x128x128xbf16>
    %29 = vector.shape_cast %28 : vector<1x128x128xbf16> to vector<128x128xbf16>
    %cst_26 = arith.constant dense<0.000000e+00> : vector<16x128xf32>
    %30 = tpu.matmul %27, %29, %cst_26 {dimension_numbers = #tpu.dot_dimension_numbers<[1], [0], [0], [1], [0, 0, 1, 1], [], []>} : vector<16x128xbf16>, vector<128x128xbf16>, vector<16x128xf32> -> vector<16x128xf32>
    %31 = arith.addf %26, %30 : vector<16x128xf32>
    %32 = vector.extract_strided_slice %3 {offsets = [2, 0], sizes = [16, 128], strides = [1, 1]} : vector<18x128xbf16> to vector<16x128xbf16>
    %c5 = arith.constant 5 : index
    %c0_27 = arith.constant 0 : index
    %c0_28 = arith.constant 0 : index
    %33 = vector.load %arg5[%c5, %c0_27, %c0_28] : memref<9x128x128xbf16, #tpu.memory_space<vmem>>, vector<1x128x128xbf16>
    %34 = vector.shape_cast %33 : vector<1x128x128xbf16> to vector<128x128xbf16>
    %cst_29 = arith.constant dense<0.000000e+00> : vector<16x128xf32>
    %35 = tpu.matmul %32, %34, %cst_29 {dimension_numbers = #tpu.dot_dimension_numbers<[1], [0], [0], [1], [0, 0, 1, 1], [], []>} : vector<16x128xbf16>, vector<128x128xbf16>, vector<16x128xf32> -> vector<16x128xf32>
    %36 = arith.addf %31, %35 : vector<16x128xf32>
    %37 = vector.extract_strided_slice %5 {offsets = [0, 0], sizes = [16, 128], strides = [1, 1]} : vector<18x128xbf16> to vector<16x128xbf16>
    %c6 = arith.constant 6 : index
    %c0_30 = arith.constant 0 : index
    %c0_31 = arith.constant 0 : index
    %38 = vector.load %arg5[%c6, %c0_30, %c0_31] : memref<9x128x128xbf16, #tpu.memory_space<vmem>>, vector<1x128x128xbf16>
    %39 = vector.shape_cast %38 : vector<1x128x128xbf16> to vector<128x128xbf16>
    %cst_32 = arith.constant dense<0.000000e+00> : vector<16x128xf32>
    %40 = tpu.matmul %37, %39, %cst_32 {dimension_numbers = #tpu.dot_dimension_numbers<[1], [0], [0], [1], [0, 0, 1, 1], [], []>} : vector<16x128xbf16>, vector<128x128xbf16>, vector<16x128xf32> -> vector<16x128xf32>
    %41 = arith.addf %36, %40 : vector<16x128xf32>
    %42 = vector.extract_strided_slice %5 {offsets = [1, 0], sizes = [16, 128], strides = [1, 1]} : vector<18x128xbf16> to vector<16x128xbf16>
    %c7 = arith.constant 7 : index
    %c0_33 = arith.constant 0 : index
    %c0_34 = arith.constant 0 : index
    %43 = vector.load %arg5[%c7, %c0_33, %c0_34] : memref<9x128x128xbf16, #tpu.memory_space<vmem>>, vector<1x128x128xbf16>
    %44 = vector.shape_cast %43 : vector<1x128x128xbf16> to vector<128x128xbf16>
    %cst_35 = arith.constant dense<0.000000e+00> : vector<16x128xf32>
    %45 = tpu.matmul %42, %44, %cst_35 {dimension_numbers = #tpu.dot_dimension_numbers<[1], [0], [0], [1], [0, 0, 1, 1], [], []>} : vector<16x128xbf16>, vector<128x128xbf16>, vector<16x128xf32> -> vector<16x128xf32>
    %46 = arith.addf %41, %45 : vector<16x128xf32>
    %47 = vector.extract_strided_slice %5 {offsets = [2, 0], sizes = [16, 128], strides = [1, 1]} : vector<18x128xbf16> to vector<16x128xbf16>
    %c8 = arith.constant 8 : index
    %c0_36 = arith.constant 0 : index
    %c0_37 = arith.constant 0 : index
    %48 = vector.load %arg5[%c8, %c0_36, %c0_37] : memref<9x128x128xbf16, #tpu.memory_space<vmem>>, vector<1x128x128xbf16>
    %49 = vector.shape_cast %48 : vector<1x128x128xbf16> to vector<128x128xbf16>
    %cst_38 = arith.constant dense<0.000000e+00> : vector<16x128xf32>
    %50 = tpu.matmul %47, %49, %cst_38 {dimension_numbers = #tpu.dot_dimension_numbers<[1], [0], [0], [1], [0, 0, 1, 1], [], []>} : vector<16x128xbf16>, vector<128x128xbf16>, vector<16x128xf32> -> vector<16x128xf32>
    %51 = arith.addf %46, %50 : vector<16x128xf32>
    %c0_39 = arith.constant 0 : index
    %c0_40 = arith.constant 0 : index
    %c0_41 = arith.constant 0 : index
    %c0_42 = arith.constant 0 : index
    %52 = vector.load %arg6[%c0_39, %c0_40, %c0_41, %c0_42] : memref<1x1x16x128xf32, #tpu.memory_space<vmem>>, vector<1x1x16x128xf32>
    %53 = vector.shape_cast %52 : vector<1x1x16x128xf32> to vector<16x128xf32>
    %54 = vector.shape_cast %51 : vector<16x128xf32> to vector<1x1x16x128xf32>
    tpu.vector_store %arg6[%c0_39, %c0_40, %c0_41, %c0_42], %54 {strides = array<i32>} : memref<1x1x16x128xf32, #tpu.memory_space<vmem>>, vector<1x1x16x128xf32>,
    %c0_i32 = arith.constant 0 : i32
    %55 = arith.cmpi eq, %arg0, %c0_i32 : i32
    %c0_i32_43 = arith.constant 0 : i32
    %56 = arith.cmpi eq, %arg1, %c0_i32_43 : i32
    %57 = arith.andi %55, %56 : i1
    %58 = arith.extui %57 : i1 to i32
    %c0_i32_44 = arith.constant 0 : i32
    %59 = arith.cmpi ne, %58, %c0_i32_44 : i32
    scf.if %59 {
      %cst_55 = arith.constant 0.000000e+00 : f32
      %71 = vector.broadcast %cst_55 : f32 to vector<1x128xf32>
      %c0_56 = arith.constant 0 : index
      %c0_57 = arith.constant 0 : index
      %72 = vector.load %arg7[%c0_56, %c0_57] : memref<1x128xf32, #tpu.memory_space<vmem>>, vector<1x128xf32>
      tpu.vector_store %arg7[%c0_56, %c0_57], %71 {strides = array<i32>} : memref<1x128xf32, #tpu.memory_space<vmem>>, vector<1x128xf32>,
      %cst_58 = arith.constant 0.000000e+00 : f32
      %73 = vector.broadcast %cst_58 : f32 to vector<1x128xf32>
      %c0_59 = arith.constant 0 : index
      %c0_60 = arith.constant 0 : index
      %74 = vector.load %arg8[%c0_59, %c0_60] : memref<1x128xf32, #tpu.memory_space<vmem>>, vector<1x128xf32>
      tpu.vector_store %arg8[%c0_59, %c0_60], %73 {strides = array<i32>} : memref<1x128xf32, #tpu.memory_space<vmem>>, vector<1x128xf32>,
    } else {
    }
    %c0_45 = arith.constant 0 : index
    %c0_46 = arith.constant 0 : index
    %60 = vector.load %arg7[%c0_45, %c0_46] : memref<1x128xf32, #tpu.memory_space<vmem>>, vector<1x128xf32>
    %cst_47 = arith.constant dense<0.000000e+00> : vector<128xf32>
    %61 = vector.multi_reduction <add>, %51, %cst_47 [0] : vector<16x128xf32> to vector<128xf32>
    %62 = vector.shape_cast %61 : vector<128xf32> to vector<1x128xf32>
    %63 = arith.addf %60, %62 : vector<1x128xf32>
    %c0_48 = arith.constant 0 : index
    %c0_49 = arith.constant 0 : index
    %64 = vector.load %arg7[%c0_48, %c0_49] : memref<1x128xf32, #tpu.memory_space<vmem>>, vector<1x128xf32>
    tpu.vector_store %arg7[%c0_48, %c0_49], %63 {strides = array<i32>} : memref<1x128xf32, #tpu.memory_space<vmem>>, vector<1x128xf32>,
    %c0_50 = arith.constant 0 : index
    %c0_51 = arith.constant 0 : index
    %65 = vector.load %arg8[%c0_50, %c0_51] : memref<1x128xf32, #tpu.memory_space<vmem>>, vector<1x128xf32>
    %66 = arith.mulf %51, %51 : vector<16x128xf32>
    %cst_52 = arith.constant dense<0.000000e+00> : vector<128xf32>
    %67 = vector.multi_reduction <add>, %66, %cst_52 [0] : vector<16x128xf32> to vector<128xf32>
    %68 = vector.shape_cast %67 : vector<128xf32> to vector<1x128xf32>
    %69 = arith.addf %65, %68 : vector<1x128xf32>
    %c0_53 = arith.constant 0 : index
    %c0_54 = arith.constant 0 : index
    %70 = vector.load %arg8[%c0_53, %c0_54] : memref<1x128xf32, #tpu.memory_space<vmem>>, vector<1x128xf32>
    tpu.vector_store %arg8[%c0_53, %c0_54], %69 {strides = array<i32>} : memref<1x128xf32, #tpu.memory_space<vmem>>, vector<1x128xf32>,
    return
  }
  func.func @transform_0(%arg0: i32, %arg1: i32) -> (i32, i32, i32, i32) {
    %c0_i32 = arith.constant 0 : i32
    %0 = arith.addi %arg1, %c0_i32 : i32
    %c0_i32_0 = arith.constant 0 : i32
    %c0_i32_1 = arith.constant 0 : i32
    %c0_i32_2 = arith.constant 0 : i32
    return %arg0, %0, %c0_i32_0, %c0_i32_1 : i32, i32, i32, i32
  }
  func.func @transform_1(%arg0: i32, %arg1: i32) -> (i32, i32, i32, i32) {
    %c1_i32 = arith.constant 1 : i32
    %0 = arith.addi %arg1, %c1_i32 : i32
    %c0_i32 = arith.constant 0 : i32
    %c0_i32_0 = arith.constant 0 : i32
    %c0_i32_1 = arith.constant 0 : i32
    return %arg0, %0, %c0_i32, %c0_i32_0 : i32, i32, i32, i32
  }
  func.func @transform_2(%arg0: i32, %arg1: i32) -> (i32, i32, i32, i32) {
    %c2_i32 = arith.constant 2 : i32
    %0 = arith.addi %arg1, %c2_i32 : i32
    %c0_i32 = arith.constant 0 : i32
    %c0_i32_0 = arith.constant 0 : i32
    %c0_i32_1 = arith.constant 0 : i32
    return %arg0, %0, %c0_i32, %c0_i32_0 : i32, i32, i32, i32
  }
  func.func @transform_3(%arg0: i32, %arg1: i32) -> (i32, i32, i32) {
    %c0_i32 = arith.constant 0 : i32
    %c0_i32_0 = arith.constant 0 : i32
    %c0_i32_1 = arith.constant 0 : i32
    %c0_i32_2 = arith.constant 0 : i32
    return %c0_i32, %c0_i32_0, %c0_i32_1 : i32, i32, i32
  }
  func.func @transform_4(%arg0: i32, %arg1: i32) -> (i32, i32, i32, i32) {
    %c0_i32 = arith.constant 0 : i32
    %c0_i32_0 = arith.constant 0 : i32
    %c0_i32_1 = arith.constant 0 : i32
    return %arg0, %arg1, %c0_i32, %c0_i32_0 : i32, i32, i32, i32
  }
  func.func @transform_5(%arg0: i32, %arg1: i32) -> (i32, i32) {
    %c0_i32 = arith.constant 0 : i32
    %c0_i32_0 = arith.constant 0 : i32
    %c0_i32_1 = arith.constant 0 : i32
    return %c0_i32, %c0_i32_0 : i32, i32
  }
  func.func @transform_6(%arg0: i32, %arg1: i32) -> (i32, i32) {
    %c0_i32 = arith.constant 0 : i32
    %c0_i32_0 = arith.constant 0 : i32
    %c0_i32_1 = arith.constant 0 : i32
    return %c0_i32, %c0_i32_0 : i32, i32
  }
}

</mosaic_0001>

<llo_original>
// kernel: out_conv_forward.3
$region0: #{out_conv_forward.3}
  #allocation0 [shape = 'u32[]', space=smem, size = 0x4, offset = 0x4, fixed_abs, tag = 'smem constant byte address 0x4 - core index']
  #allocation1 [shape = 'u32[72,128]{1,0:T(1,128)}', space=vmem, size = 0x9000, scoped, tag = 'internal scratch']
  %s0 = inlined_call_operand.vmem [shape: f32[512,128], index: 0, kind: input, shape index: {}]
  %s1 = inlined_call_operand.vmem [shape: f32[1,128], index: 1, kind: input, shape index: {}]
  %s2 = inlined_call_operand.vmem [shape: f32[1,128], index: 2, kind: input, shape index: {}]
  %s3 = inlined_call_operand.vmem [shape: f32[1,128], index: 3, kind: input, shape index: {}]
  %s4 = inlined_call_operand.vmem [shape: f32[1,128], index: 4, kind: input, shape index: {}]
  %s5 = inlined_call_operand.vmem [shape: bf16[128,128], index: 5, kind: input, shape index: {}]
  %s6 = inlined_call_operand.vmem [shape: f32[512,128], index: 6, kind: output, shape index: {}]
  %s7 = sld [smem:[#allocation0]]
  $region57: #{out_conv_forward.3} parent=0
    _
  %s9 = ssub.s32 1, %s7
  %s10 = scalar_select 0, %s9, %s7
  loop: start=0, step=1, limit=4
  $region2: #{out_conv_forward.3} parent=0 // loop_pre_header
    _
  $region3: #{out_conv_forward.3} parent=0 // loop_header
    %s12 = sphi 0, %s16
    %p13 = scmp.ge.s32.totalorder %s12, 4
    %s22 = sphi 0, %s24
    %s25 = sphi 0, %s22
    %s26 = sphi 0, %s25
    %s42 = sphi 0, %s26
    %s46 = sphi 0, %s46
    %s48 = sphi 0, %s46
    %s49 = sphi 0, %s48
    %s63 = sphi 0, %s49
    %s67 = sphi 0, %s67
    %s69 = sphi 0, %s67
    %s70 = sphi 0, %s69
    %s84 = sphi 0, %s70
    %s88 = sphi 0, %s88
    %s90 = sphi 0, %s88
    %s91 = sphi 0, %s90
    %s105 = sphi 0, %s91
    %s109 = sphi 0, %s109
    %s111 = sphi 0, %s109
    %s112 = sphi 0, %s111
    %s126 = sphi 0, %s112
    %s130 = sphi 0, %s130
    %s132 = sphi 0, %s130
    %s133 = sphi 0, %s132
    %s147 = sphi 0, %s133
    %s153 = sphi 0, %s155
    %s156 = sphi 0, %s153
    %s157 = sphi 0, %s156
    %s173 = sphi 0, %s157
  $region4: #{out_conv_forward.3} parent=0 // loop_header_branch
    %15 = sbr.rel (%p13) target = $region8
  $region5: #{out_conv_forward.3} parent=0 // loop_body
    %s17 = ssub.s32 %s12, 1
    %s18 = ssub.s32 %s12, 2
    %s19 = sadd.s32 %s12, 1
    %s20 = ssub.s32 %s12, %s19
    %p21 = scmp.eq.s32.totalorder %s20, 0
    %s23 = sadd.s32 %s22, 1
    %s24 = scalar_select %p21, %s22, %s23
    %p27 = pneg %p21
    %p28 = scmp.eq.s32.totalorder %s12, 1
    %p29 = por %p27, %p28
    %p30 = scmp.ne.s32.totalorder %s22, %s25
    %p31 = scmp.eq.s32.totalorder %s12, 0
    %p32 = por %p30, %p31
    %p33 = scmp.ne.s32.totalorder %s22, %s25
    %p34 = scmp.eq.s32.totalorder %s17, 1
    %p35 = por %p33, %p34
    %p36 = scmp.ne.s32.totalorder %s25, %s26
    %p37 = scmp.eq.s32.totalorder %s17, 0
    %p38 = por %p36, %p37
    %p39 = scmp.ne.s32.totalorder %s25, %s26
    %p40 = scmp.eq.s32.totalorder %s18, 1
    %p41 = por %p39, %p40
    %p43 = scmp.ne.s32.totalorder %s26, %s42
    %p44 = scmp.eq.s32.totalorder %s18, 0
    %p45 = por %p43, %p44
    %s47 = sadd.s32 %s46, 1
    %p50 = scmp.eq.s32.totalorder %s12, 1
    %p51 = scmp.ne.s32.totalorder %s46, %s48
    %p52 = scmp.eq.s32.totalorder %s12, 0
    %p53 = por %p51, %p52
    %p54 = scmp.ne.s32.totalorder %s46, %s48
    %p55 = scmp.eq.s32.totalorder %s17, 1
    %p56 = por %p54, %p55
    %p57 = scmp.ne.s32.totalorder %s48, %s49
    %p58 = scmp.eq.s32.totalorder %s17, 0
    %p59 = por %p57, %p58
    %p60 = scmp.ne.s32.totalorder %s48, %s49
    %p61 = scmp.eq.s32.totalorder %s18, 1
    %p62 = por %p60, %p61
    %p64 = scmp.ne.s32.totalorder %s49, %s63
    %p65 = scmp.eq.s32.totalorder %s18, 0
    %p66 = por %p64, %p65
    %s68 = sadd.s32 %s67, 1
    %p71 = scmp.eq.s32.totalorder %s12, 1
    %p72 = scmp.ne.s32.totalorder %s67, %s69
    %p73 = scmp.eq.s32.totalorder %s12, 0
    %p74 = por %p72, %p73
    %p75 = scmp.ne.s32.totalorder %s67, %s69
    %p76 = scmp.eq.s32.totalorder %s17, 1
    %p77 = por %p75, %p76
    %p78 = scmp.ne.s32.totalorder %s69, %s70
    %p79 = scmp.eq.s32.totalorder %s17, 0
    %p80 = por %p78, %p79
    %p81 = scmp.ne.s32.totalorder %s69, %s70
    %p82 = scmp.eq.s32.totalorder %s18, 1
    %p83 = por %p81, %p82
    %p85 = scmp.ne.s32.totalorder %s70, %s84
    %p86 = scmp.eq.s32.totalorder %s18, 0
    %p87 = por %p85, %p86
    %s89 = sadd.s32 %s88, 1
    %p92 = scmp.eq.s32.totalorder %s12, 1
    %p93 = scmp.ne.s32.totalorder %s88, %s90
    %p94 = scmp.eq.s32.totalorder %s12, 0
    %p95 = por %p93, %p94
    %p96 = scmp.ne.s32.totalorder %s88, %s90
    %p97 = scmp.eq.s32.totalorder %s17, 1
    %p98 = por %p96, %p97
    %p99 = scmp.ne.s32.totalorder %s90, %s91
    %p100 = scmp.eq.s32.totalorder %s17, 0
    %p101 = por %p99, %p100
    %p102 = scmp.ne.s32.totalorder %s90, %s91
    %p103 = scmp.eq.s32.totalorder %s18, 1
    %p104 = por %p102, %p103
    %p106 = scmp.ne.s32.totalorder %s91, %s105
    %p107 = scmp.eq.s32.totalorder %s18, 0
    %p108 = por %p106, %p107
    %s110 = sadd.s32 %s109, 1
    %p113 = scmp.eq.s32.totalorder %s12, 1
    %p114 = scmp.ne.s32.totalorder %s109, %s111
    %p115 = scmp.eq.s32.totalorder %s12, 0
    %p116 = por %p114, %p115
    %p117 = scmp.ne.s32.totalorder %s109, %s111
    %p118 = scmp.eq.s32.totalorder %s17, 1
    %p119 = por %p117, %p118
    %p120 = scmp.ne.s32.totalorder %s111, %s112
    %p121 = scmp.eq.s32.totalorder %s17, 0
    %p122 = por %p120, %p121
    %p123 = scmp.ne.s32.totalorder %s111, %s112
    %p124 = scmp.eq.s32.totalorder %s18, 1
    %p125 = por %p123, %p124
    %p127 = scmp.ne.s32.totalorder %s112, %s126
    %p128 = scmp.eq.s32.totalorder %s18, 0
    %p129 = por %p127, %p128
    %s131 = sadd.s32 %s130, 1
    %p134 = scmp.eq.s32.totalorder %s12, 1
    %p135 = scmp.ne.s32.totalorder %s130, %s132
    %p136 = scmp.eq.s32.totalorder %s12, 0
    %p137 = por %p135, %p136
    %p138 = scmp.ne.s32.totalorder %s130, %s132
    %p139 = scmp.eq.s32.totalorder %s17, 1
    %p140 = por %p138, %p139
    %p141 = scmp.ne.s32.totalorder %s132, %s133
    %p142 = scmp.eq.s32.totalorder %s17, 0
    %p143 = por %p141, %p142
    %p144 = scmp.ne.s32.totalorder %s132, %s133
    %p145 = scmp.eq.s32.totalorder %s18, 1
    %p146 = por %p144, %p145
    %p148 = scmp.ne.s32.totalorder %s133, %s147
    %p149 = scmp.eq.s32.totalorder %s18, 0
    %p150 = por %p148, %p149
    %s151 = ssub.s32 %s12, %s19
    %p152 = scmp.eq.s32.totalorder %s151, 0
    %s154 = sadd.s32 %s153, 1
    %s155 = scalar_select %p152, %s153, %s154
    %p158 = pneg %p152
    %p159 = scmp.eq.s32.totalorder %s12, 1
    %p160 = por %p158, %p159
    %p161 = scmp.ne.s32.totalorder %s153, %s156
    %p162 = scmp.eq.s32.totalorder %s12, 0
    %p163 = por %p161, %p162
    %p164 = scmp.ne.s32.totalorder %s153, %s156
    %p165 = scmp.eq.s32.totalorder %s17, 1
    %p166 = por %p164, %p165
    %p167 = scmp.ne.s32.totalorder %s156, %s157
    %p168 = scmp.eq.s32.totalorder %s17, 0
    %p169 = por %p167, %p168
    %p170 = scmp.ne.s32.totalorder %s156, %s157
    %p171 = scmp.eq.s32.totalorder %s18, 1
    %p172 = por %p170, %p171
    %p174 = scmp.ne.s32.totalorder %s157, %s173
    %p175 = scmp.eq.s32.totalorder %s18, 0
    %p176 = por %p174, %p175
    %p177 = scmp.le.s32.totalorder 1, %s12
    %p178 = scmp.lt.s32.totalorder %s12, 3
    %p179 = pnand %p177, %p178
    %p180 = pneg %p179
    // Predicated region
    $region9: #{out_conv_forward.3} parent=5 // pred_check
      _
    $region10: #{out_conv_forward.3} parent=5 // pred_check_branch
      %182 = sbr.rel (%p179) target = $region12
    $region11: #{out_conv_forward.3} parent=5 // pred_region
      %s183 = ssub.s32 %s12, 1
      // Predicated region
      $region13: #{out_conv_forward.3} parent=11 // pred_check
        %p184 = pneg %p59
      $region14: #{out_conv_forward.3} parent=11 // pred_check_branch
        %186 = sbr.rel (%p184) target = $region16
      $region15: #{out_conv_forward.3} parent=11 // pred_region
        _
      $region16: #{out_conv_forward.3} parent=11 // pred_fallthru
        _
      // Predicated region
      $region17: #{out_conv_forward.3} parent=11 // pred_check
        %p187 = pneg %p80
      $region18: #{out_conv_forward.3} parent=11 // pred_check_branch
        %189 = sbr.rel (%p187) target = $region20
      $region19: #{out_conv_forward.3} parent=11 // pred_region
        _
      $region20: #{out_conv_forward.3} parent=11 // pred_fallthru
        _
      // Predicated region
      $region21: #{out_conv_forward.3} parent=11 // pred_check
        %p190 = pneg %p101
      $region22: #{out_conv_forward.3} parent=11 // pred_check_branch
        %192 = sbr.rel (%p190) target = $region24
      $region23: #{out_conv_forward.3} parent=11 // pred_region
        _
      $region24: #{out_conv_forward.3} parent=11 // pred_fallthru
        _
      // Predicated region
      $region25: #{out_conv_forward.3} parent=11 // pred_check
        %p193 = pneg %p122
      $region26: #{out_conv_forward.3} parent=11 // pred_check_branch
        %195 = sbr.rel (%p193) target = $region28
      $region27: #{out_conv_forward.3} parent=11 // pred_region
        _
      $region28: #{out_conv_forward.3} parent=11 // pred_fallthru
        _
      // Predicated region
      $region29: #{out_conv_forward.3} parent=11 // pred_check
        %p196 = pneg %p143
      $region30: #{out_conv_forward.3} parent=11 // pred_check_branch
        %198 = sbr.rel (%p196) target = $region32
      $region31: #{out_conv_forward.3} parent=11 // pred_region
        _
      $region32: #{out_conv_forward.3} parent=11 // pred_fallthru
        _
    $region12: #{out_conv_forward.3} parent=5 // pred_fallthru
      _
    %p199 = scmp.lt.s32.totalorder %s12, 2
    // Predicated region
    $region33: #{out_conv_forward.3} parent=5 // pred_check
      %p200 = pneg %p199
    $region34: #{out_conv_forward.3} parent=5 // pred_check_branch
      %202 = sbr.rel (%p200) target = $region36
    $region35: #{out_conv_forward.3} parent=5 // pred_region
      // Predicated region
      $region37: #{out_conv_forward.3} parent=35 // pred_check
        %p203 = pneg %p32
      $region38: #{out_conv_forward.3} parent=35 // pred_check_branch
        %205 = sbr.rel (%p203) target = $region40
      $region39: #{out_conv_forward.3} parent=35 // pred_region
        %s206 = smul.u32 32, %s12
        %p207 = scmp.lt.s32.totalorder %s206, 63
        %s208 = scalar_select %p207, %s206, 63
        %s209 = smul.addr %s208, 8
        %s210 = scalar_lea.vmem %s0, %s209
        %s211 = smul.u32 32, %s12
      $region40: #{out_conv_forward.3} parent=35 // pred_fallthru
        _
    $region36: #{out_conv_forward.3} parent=5 // pred_fallthru
      _
    %p212 = scmp.le.s32.totalorder 1, %s12
    %p213 = scmp.lt.s32.totalorder %s12, 3
    %p214 = pnand %p212, %p213
    %p215 = pneg %p214
    // Predicated region
    $region41: #{out_conv_forward.3} parent=5 // pred_check
      _
    $region42: #{out_conv_forward.3} parent=5 // pred_check_branch
      %217 = sbr.rel (%p214) target = $region44
    $region43: #{out_conv_forward.3} parent=5 // pred_region
      %s218 = ssub.s32 %s12, 1
      %s219 = smul.u32 32, %s17
      %p220 = scmp.lt.s32.totalorder %s219, 63
      %s221 = scalar_select %p220, %s219, 63
      %s222 = smul.addr %s221, 8
      %s223 = scalar_lea.vmem %s0, %s222
      %p224 = pneg %p38
      %p225 = pneg %p35
      %p226 = pneg %p59
      %p227 = pneg %p56
      %p228 = pneg %p80
      %p229 = pneg %p77
      %p230 = pneg %p101
      %p231 = pneg %p98
      %p232 = pneg %p122
      %p233 = pneg %p119
      %p234 = pneg %p143
      %p235 = pneg %p140
      %p236 = pneg %p169
      %p237 = pneg %p166
      %s238 = smul.u32 32, %s17
      %p239 = scmp.lt.s32.totalorder %s238, 63
      %s240 = scalar_select %p239, %s238, 63
      %s241 = smul.addr %s240, 8
      %s242 = scalar_lea.vmem %s6, %s241
      %s243 = smul.u32 32, %s17
      %p244 = scmp.lt.s32.totalorder %s243, 63
      %s245 = scalar_select %p244, %s243, 63
      %s246 = smul.addr %s245, 8
      %s247 = scalar_lea.vmem %s0, %s246
      %s248 = smul.u32 32, %s17
      %s249 = smul.u32 32, %s17
      %p250 = scmp.lt.s32.totalorder %s249, 63
      %s251 = scalar_select %p250, %s249, 63
      %s252 = smul.addr %s251, 8
      %s253 = scalar_lea.vmem %s6, %s252
      %s254 = smul.u32 32, %s17
      %v255 = vld [vmem:[%s1] sm:$0x1]
      %v256 = vmul.f32 %v255, 0.001953125
      %v257 = vld [vmem:[%s2] sm:$0x1]
      %v258 = vmul.f32 %v257, 0.001953125
      %v259 = vmul.f32 %v256, %v256
      %v260 = vsub.f32 %v258, %v259
      %v261 = vld [vmem:[%s3] sm:$0x1]
      %v262 = vadd.f32 %v260, 1e-05
      %v263 = vrsqrt.pop %v262
      %v264 = vmul.f32 %v263, %v262
      %v265 = vmul.f32 %v264, %v263
      %v266 = vmul.f32 0.5, %v265
      %v267 = vsub.f32 1.5, %v266
      %v268 = vmul.f32 %v263, %v267
      %vm269 = vweird.f32 %v262
      %vm270 = vweird.f32 %v263
      %vm271 = vmor %vm269, %vm270
      %v272 = vsel %vm271, %v263, %v268
      %v273 = vmul.f32 %v261, %v272
      %v274 = vld [vmem:[%s4] sm:$0x1]
      %v275 = vmul.f32 %v256, %v273
      %v276 = vsub.f32 %v274, %v275
      %v277 = vld [vmem:[%s247] sm:$0xff]
      %v278 = vld [vmem:[%s247 + $0x8] sm:$0xff]
      %v279 = vld [vmem:[%s247 + $0x10] sm:$0xff]
      %v280 = vld [vmem:[%s247 + $0x18] sm:$0xff]
      %v281 = vld [vmem:[%s247 + $0x20] sm:$0xff]
      %v282 = vld [vmem:[%s247 + $0x28] sm:$0xff]
      %v283 = vld [vmem:[%s247 + $0x30] sm:$0xff]
      %v284 = vld [vmem:[%s247 + $0x38] sm:$0xff]
      %v285 = vld [vmem:[%s247 + $0x40] sm:$0xff]
      %v286 = vld [vmem:[%s247 + $0x48] sm:$0xff]
      %v287 = vld [vmem:[%s247 + $0x50] sm:$0xff]
      %v288 = vld [vmem:[%s247 + $0x58] sm:$0xff]
      %v289 = vld [vmem:[%s247 + $0x60] sm:$0xff]
      %v290 = vld [vmem:[%s247 + $0x68] sm:$0xff]
      %v291 = vld [vmem:[%s247 + $0x70] sm:$0xff]
      %v292 = vld [vmem:[%s247 + $0x78] sm:$0xff]
      %v293 = vld [vmem:[%s247 + $0x80] sm:$0xff]
      %v294 = vld [vmem:[%s247 + $0x88] sm:$0xff]
      %v295 = vld [vmem:[%s247 + $0x90] sm:$0xff]
      %v296 = vld [vmem:[%s247 + $0x98] sm:$0xff]
      %v297 = vld [vmem:[%s247 + $0xa0] sm:$0xff]
      %v298 = vld [vmem:[%s247 + $0xa8] sm:$0xff]
      %v299 = vld [vmem:[%s247 + $0xb0] sm:$0xff]
      %v300 = vld [vmem:[%s247 + $0xb8] sm:$0xff]
      %v301 = vld [vmem:[%s247 + $0xc0] sm:$0xff]
      %v302 = vld [vmem:[%s247 + $0xc8] sm:$0xff]
      %v303 = vld [vmem:[%s247 + $0xd0] sm:$0xff]
      %v304 = vld [vmem:[%s247 + $0xd8] sm:$0xff]
      %v305 = vld [vmem:[%s247 + $0xe0] sm:$0xff]
      %v306 = vld [vmem:[%s247 + $0xe8] sm:$0xff]
      %v307 = vld [vmem:[%s247 + $0xf0] sm:$0xff]
      %v308 = vld [vmem:[%s247 + $0xf8] sm:$0xff]
      %v310 = vperm.slane %v273, 0
      %v312 = vmul.f32 %v277, %v310
      %v313 = vmul.f32 %v278, %v310
      %v314 = vmul.f32 %v279, %v310
      %v315 = vmul.f32 %v280, %v310
      %v316 = vmul.f32 %v281, %v310
      %v317 = vmul.f32 %v282, %v310
      %v318 = vmul.f32 %v283, %v310
      %v319 = vmul.f32 %v284, %v310
      %v320 = vmul.f32 %v285, %v310
      %v321 = vmul.f32 %v286, %v310
      %v322 = vmul.f32 %v287, %v310
      %v323 = vmul.f32 %v288, %v310
      %v324 = vmul.f32 %v289, %v310
      %v325 = vmul.f32 %v290, %v310
      %v326 = vmul.f32 %v291, %v310
      %v327 = vmul.f32 %v292, %v310
      %v328 = vmul.f32 %v293, %v310
      %v329 = vmul.f32 %v294, %v310
      %v330 = vmul.f32 %v295, %v310
      %v331 = vmul.f32 %v296, %v310
      %v332 = vmul.f32 %v297, %v310
      %v333 = vmul.f32 %v298, %v310
      %v334 = vmul.f32 %v299, %v310
      %v335 = vmul.f32 %v300, %v310
      %v336 = vmul.f32 %v301, %v310
      %v337 = vmul.f32 %v302, %v310
      %v338 = vmul.f32 %v303, %v310
      %v339 = vmul.f32 %v304, %v310
      %v340 = vmul.f32 %v305, %v310
      %v341 = vmul.f32 %v306, %v310
      %v342 = vmul.f32 %v307, %v310
      %v343 = vmul.f32 %v308, %v310
      %v345 = vperm.slane %v276, 0
      %v347 = vadd.f32 %v312, %v345
      %v348 = vadd.f32 %v313, %v345
      %v349 = vadd.f32 %v314, %v345
      %v350 = vadd.f32 %v315, %v345
      %v351 = vadd.f32 %v316, %v345
      %v352 = vadd.f32 %v317, %v345
      %v353 = vadd.f32 %v318, %v345
      %v354 = vadd.f32 %v319, %v345
      %v355 = vadd.f32 %v320, %v345
      %v356 = vadd.f32 %v321, %v345
      %v357 = vadd.f32 %v322, %v345
      %v358 = vadd.f32 %v323, %v345
      %v359 = vadd.f32 %v324, %v345
      %v360 = vadd.f32 %v325, %v345
      %v361 = vadd.f32 %v326, %v345
      %v362 = vadd.f32 %v327, %v345
      %v363 = vadd.f32 %v328, %v345
      %v364 = vadd.f32 %v329, %v345
      %v365 = vadd.f32 %v330, %v345
      %v366 = vadd.f32 %v331, %v345
      %v367 = vadd.f32 %v332, %v345
      %v368 = vadd.f32 %v333, %v345
      %v369 = vadd.f32 %v334, %v345
      %v370 = vadd.f32 %v335, %v345
      %v371 = vadd.f32 %v336, %v345
      %v372 = vadd.f32 %v337, %v345
      %v373 = vadd.f32 %v338, %v345
      %v374 = vadd.f32 %v339, %v345
      %v375 = vadd.f32 %v340, %v345
      %v376 = vadd.f32 %v341, %v345
      %v377 = vadd.f32 %v342, %v345
      %v378 = vadd.f32 %v343, %v345
      %v379 = vmax.f32 %v347, 0.0
      %v380 = vmax.f32 %v348, 0.0
      %v381 = vmax.f32 %v349, 0.0
      %v382 = vmax.f32 %v350, 0.0
      %v383 = vmax.f32 %v351, 0.0
      %v384 = vmax.f32 %v352, 0.0
      %v385 = vmax.f32 %v353, 0.0
      %v386 = vmax.f32 %v354, 0.0
      %v387 = vmax.f32 %v355, 0.0
      %v388 = vmax.f32 %v356, 0.0
      %v389 = vmax.f32 %v357, 0.0
      %v390 = vmax.f32 %v358, 0.0
      %v391 = vmax.f32 %v359, 0.0
      %v392 = vmax.f32 %v360, 0.0
      %v393 = vmax.f32 %v361, 0.0
      %v394 = vmax.f32 %v362, 0.0
      %v395 = vmax.f32 %v363, 0.0
      %v396 = vmax.f32 %v364, 0.0
      %v397 = vmax.f32 %v365, 0.0
      %v398 = vmax.f32 %v366, 0.0
      %v399 = vmax.f32 %v367, 0.0
      %v400 = vmax.f32 %v368, 0.0
      %v401 = vmax.f32 %v369, 0.0
      %v402 = vmax.f32 %v370, 0.0
      %v403 = vmax.f32 %v371, 0.0
      %v404 = vmax.f32 %v372, 0.0
      %v405 = vmax.f32 %v373, 0.0
      %v406 = vmax.f32 %v374, 0.0
      %v407 = vmax.f32 %v375, 0.0
      %v408 = vmax.f32 %v376, 0.0
      %v409 = vmax.f32 %v377, 0.0
      %v410 = vmax.f32 %v378, 0.0
      %v411 = vpack.c.bf16 %v380, %v379
      %v412 = vpack.c.bf16 %v382, %v381
      %v413 = vpack.c.bf16 %v384, %v383
      %v414 = vpack.c.bf16 %v386, %v385
      %v415 = vpack.c.bf16 %v388, %v387
      %v416 = vpack.c.bf16 %v390, %v389
      %v417 = vpack.c.bf16 %v392, %v391
      %v418 = vpack.c.bf16 %v394, %v393
      %v419 = vpack.c.bf16 %v396, %v395
      %v420 = vpack.c.bf16 %v398, %v397
      %v421 = vpack.c.bf16 %v400, %v399
      %v422 = vpack.c.bf16 %v402, %v401
      %v423 = vpack.c.bf16 %v404, %v403
      %v424 = vpack.c.bf16 %v406, %v405
      %v425 = vpack.c.bf16 %v408, %v407
      %v426 = vpack.c.bf16 %v410, %v409
      %v427 = vld [vmem:[%s5] sm:$0xf]
      %v428 = vld [vmem:[%s5 + $0x4] sm:$0xf]
      %v429 = vld [vmem:[%s5 + $0x8] sm:$0xf]
      %v430 = vld [vmem:[%s5 + $0xc] sm:$0xf]
      %v431 = vld [vmem:[%s5 + $0x10] sm:$0xf]
      %v432 = vld [vmem:[%s5 + $0x14] sm:$0xf]
      %v433 = vld [vmem:[%s5 + $0x18] sm:$0xf]
      %v434 = vld [vmem:[%s5 + $0x1c] sm:$0xf]
      %v435 = vld [vmem:[%s5 + $0x20] sm:$0xf]
      %v436 = vld [vmem:[%s5 + $0x24] sm:$0xf]
      %v437 = vld [vmem:[%s5 + $0x28] sm:$0xf]
      %v438 = vld [vmem:[%s5 + $0x2c] sm:$0xf]
      %v439 = vld [vmem:[%s5 + $0x30] sm:$0xf]
      %v440 = vld [vmem:[%s5 + $0x34] sm:$0xf]
      %v441 = vld [vmem:[%s5 + $0x38] sm:$0xf]
      %v442 = vld [vmem:[%s5 + $0x3c] sm:$0xf]
      %v459 = vunpack.c.l.b16 %v427
      %v460 = vunpack.c.l.b16 %v428
      %v461 = vunpack.c.l.b16 %v429
      %v462 = vunpack.c.l.b16 %v430
      %v463 = vunpack.c.l.b16 %v431
      %v464 = vunpack.c.l.b16 %v432
      %v465 = vunpack.c.l.b16 %v433
      %v466 = vunpack.c.l.b16 %v434
      %v467 = vunpack.c.l.b16 %v435
      %v468 = vunpack.c.l.b16 %v436
      %v469 = vunpack.c.l.b16 %v437
      %v470 = vunpack.c.l.b16 %v438
      %v471 = vunpack.c.l.b16 %v439
      %v472 = vunpack.c.l.b16 %v440
      %v473 = vunpack.c.l.b16 %v441
      %v474 = vunpack.c.l.b16 %v442
      %v475 = vpack.c.b16 %v460, %v459
      %v476 = vpack.c.b16 %v462, %v461
      %v477 = vpack.c.b16 %v464, %v463
      %v478 = vpack.c.b16 %v466, %v465
      %v479 = vpack.c.b16 %v468, %v467
      %v480 = vpack.c.b16 %v470, %v469
      %v481 = vpack.c.b16 %v472, %v471
      %v482 = vpack.c.b16 %v474, %v473
      %491 = vmatpush.bf16.msra.mxu0 %v482
      %492 = vmatpush.bf16.msra.mxu0 %v481
      %493 = vmatpush.bf16.msra.mxu0 %v480
      %494 = vmatpush.bf16.msra.mxu0 %v479
      %495 = vmatpush.bf16.msra.mxu0 %v478
      %496 = vmatpush.bf16.msra.mxu0 %v477
      %497 = vmatpush.bf16.msra.mxu0 %v476
      %498 = vmatpush.bf16.msra.mxu0 %v475
      %499 = vmatmul.bf16.gmra.mxu0 %v411
      %v500 = vpop.f32.mrf.mxu0
      %v501 = vadd.f32 0.0, %v500
      %v502 = vpop.f32.mrf.mxu0
      %v503 = vadd.f32 0.0, %v502
      %504 = vmatmul.bf16.gmra.mxu0 %v412
      %v505 = vpop.f32.mrf.mxu0
      %v506 = vadd.f32 0.0, %v505
      %v507 = vpop.f32.mrf.mxu0
      %v508 = vadd.f32 0.0, %v507
      %509 = vmatmul.bf16.gmra.mxu0 %v413
      %v510 = vpop.f32.mrf.mxu0
      %v511 = vadd.f32 0.0, %v510
      %v512 = vpop.f32.mrf.mxu0
      %v513 = vadd.f32 0.0, %v512
      %514 = vmatmul.bf16.gmra.mxu0 %v414
      %v515 = vpop.f32.mrf.mxu0
      %v516 = vadd.f32 0.0, %v515
      %v517 = vpop.f32.mrf.mxu0
      %v518 = vadd.f32 0.0, %v517
      %519 = vmatmul.bf16.gmra.mxu0 %v415
      %v520 = vpop.f32.mrf.mxu0
      %v521 = vadd.f32 0.0, %v520
      %v522 = vpop.f32.mrf.mxu0
      %v523 = vadd.f32 0.0, %v522
      %524 = vmatmul.bf16.gmra.mxu0 %v416
      %v525 = vpop.f32.mrf.mxu0
      %v526 = vadd.f32 0.0, %v525
      %v527 = vpop.f32.mrf.mxu0
      %v528 = vadd.f32 0.0, %v527
      %529 = vmatmul.bf16.gmra.mxu0 %v417
      %v530 = vpop.f32.mrf.mxu0
      %v531 = vadd.f32 0.0, %v530
      %v532 = vpop.f32.mrf.mxu0
      %v533 = vadd.f32 0.0, %v532
      %534 = vmatmul.bf16.gmra.mxu0 %v418
      %v535 = vpop.f32.mrf.mxu0
      %v536 = vadd.f32 0.0, %v535
      %v537 = vpop.f32.mrf.mxu0
      %v538 = vadd.f32 0.0, %v537
      %539 = vmatmul.bf16.gmra.mxu0 %v419
      %v540 = vpop.f32.mrf.mxu0
      %v541 = vadd.f32 0.0, %v540
      %v542 = vpop.f32.mrf.mxu0
      %v543 = vadd.f32 0.0, %v542
      %544 = vmatmul.bf16.gmra.mxu0 %v420
      %v545 = vpop.f32.mrf.mxu0
      %v546 = vadd.f32 0.0, %v545
      %v547 = vpop.f32.mrf.mxu0
      %v548 = vadd.f32 0.0, %v547
      %549 = vmatmul.bf16.gmra.mxu0 %v421
      %v550 = vpop.f32.mrf.mxu0
      %v551 = vadd.f32 0.0, %v550
      %v552 = vpop.f32.mrf.mxu0
      %v553 = vadd.f32 0.0, %v552
      %554 = vmatmul.bf16.gmra.mxu0 %v422
      %v555 = vpop.f32.mrf.mxu0
      %v556 = vadd.f32 0.0, %v555
      %v557 = vpop.f32.mrf.mxu0
      %v558 = vadd.f32 0.0, %v557
      %559 = vmatmul.bf16.gmra.mxu0 %v423
      %v560 = vpop.f32.mrf.mxu0
      %v561 = vadd.f32 0.0, %v560
      %v562 = vpop.f32.mrf.mxu0
      %v563 = vadd.f32 0.0, %v562
      %564 = vmatmul.bf16.gmra.mxu0 %v424
      %v565 = vpop.f32.mrf.mxu0
      %v566 = vadd.f32 0.0, %v565
      %v567 = vpop.f32.mrf.mxu0
      %v568 = vadd.f32 0.0, %v567
      %569 = vmatmul.bf16.gmra.mxu0 %v425
      %v570 = vpop.f32.mrf.mxu0
      %v571 = vadd.f32 0.0, %v570
      %v572 = vpop.f32.mrf.mxu0
      %v573 = vadd.f32 0.0, %v572
      %574 = vmatmul.bf16.gmra.mxu0 %v426
      %v575 = vpop.f32.mrf.mxu0
      %v576 = vadd.f32 0.0, %v575
      %v577 = vpop.f32.mrf.mxu0
      %v578 = vadd.f32 0.0, %v577
      %579 = vdwg.mxu0
      %580 = vst [vmem:[%s253] sm:$0xff] %v501
      %581 = vst [vmem:[%s253 + $0x8] sm:$0xff] %v503
      %582 = vst [vmem:[%s253 + $0x10] sm:$0xff] %v506
      %583 = vst [vmem:[%s253 + $0x18] sm:$0xff] %v508
      %584 = vst [vmem:[%s253 + $0x20] sm:$0xff] %v511
      %585 = vst [vmem:[%s253 + $0x28] sm:$0xff] %v513
      %586 = vst [vmem:[%s253 + $0x30] sm:$0xff] %v516
      %587 = vst [vmem:[%s253 + $0x38] sm:$0xff] %v518
      %588 = vst [vmem:[%s253 + $0x40] sm:$0xff] %v521
      %589 = vst [vmem:[%s253 + $0x48] sm:$0xff] %v523
      %590 = vst [vmem:[%s253 + $0x50] sm:$0xff] %v526
      %591 = vst [vmem:[%s253 + $0x58] sm:$0xff] %v528
      %592 = vst [vmem:[%s253 + $0x60] sm:$0xff] %v531
      %593 = vst [vmem:[%s253 + $0x68] sm:$0xff] %v533
      %594 = vst [vmem:[%s253 + $0x70] sm:$0xff] %v536
      %595 = vst [vmem:[%s253 + $0x78] sm:$0xff] %v538
      %596 = vst [vmem:[%s253 + $0x80] sm:$0xff] %v541
      %597 = vst [vmem:[%s253 + $0x88] sm:$0xff] %v543
      %598 = vst [vmem:[%s253 + $0x90] sm:$0xff] %v546
      %599 = vst [vmem:[%s253 + $0x98] sm:$0xff] %v548
      %600 = vst [vmem:[%s253 + $0xa0] sm:$0xff] %v551
      %601 = vst [vmem:[%s253 + $0xa8] sm:$0xff] %v553
      %602 = vst [vmem:[%s253 + $0xb0] sm:$0xff] %v556
      %603 = vst [vmem:[%s253 + $0xb8] sm:$0xff] %v558
      %604 = vst [vmem:[%s253 + $0xc0] sm:$0xff] %v561
      %605 = vst [vmem:[%s253 + $0xc8] sm:$0xff] %v563
      %606 = vst [vmem:[%s253 + $0xd0] sm:$0xff] %v566
      %607 = vst [vmem:[%s253 + $0xd8] sm:$0xff] %v568
      %608 = vst [vmem:[%s253 + $0xe0] sm:$0xff] %v571
      %609 = vst [vmem:[%s253 + $0xe8] sm:$0xff] %v573
      %610 = vst [vmem:[%s253 + $0xf0] sm:$0xff] %v576
      %611 = vst [vmem:[%s253 + $0xf8] sm:$0xff] %v578
      %s612 = smul.u32 32, %s17
      %p613 = scmp.lt.s32.totalorder %s612, 63
      %s614 = scalar_select %p613, %s612, 63
      %s615 = smul.addr %s614, 8
      %s616 = scalar_lea.vmem %s6, %s615
      // Predicated region
      $region45: #{out_conv_forward.3} parent=43 // pred_check
        %p617 = pneg %p166
      $region46: #{out_conv_forward.3} parent=43 // pred_check_branch
        %619 = sbr.rel (%p617) target = $region48
      $region47: #{out_conv_forward.3} parent=43 // pred_region
        %s620 = smul.u32 32, %s17
      $region48: #{out_conv_forward.3} parent=43 // pred_fallthru
        _
    $region44: #{out_conv_forward.3} parent=5 // pred_fallthru
      _
    %p621 = scmp.le.s32.totalorder 2, %s12
    // Predicated region
    $region49: #{out_conv_forward.3} parent=5 // pred_check
      %p622 = pneg %p621
    $region50: #{out_conv_forward.3} parent=5 // pred_check_branch
      %624 = sbr.rel (%p622) target = $region52
    $region51: #{out_conv_forward.3} parent=5 // pred_region
      %s625 = ssub.s32 %s12, 2
      // Predicated region
      $region53: #{out_conv_forward.3} parent=51 // pred_check
        %p626 = pneg %p172
      $region54: #{out_conv_forward.3} parent=51 // pred_check_branch
        %628 = sbr.rel (%p626) target = $region56
      $region55: #{out_conv_forward.3} parent=51 // pred_region
        %s629 = smul.u32 32, %s18
        %p630 = scmp.lt.s32.totalorder %s629, 63
        %s631 = scalar_select %p630, %s629, 63
        %s632 = smul.addr %s631, 8
        %s633 = scalar_lea.vmem %s6, %s632
      $region56: #{out_conv_forward.3} parent=51 // pred_fallthru
        _
    $region52: #{out_conv_forward.3} parent=5 // pred_fallthru
      _
  $region6: #{out_conv_forward.3} parent=0 // loop_footer
    %s16 = sadd.s32 1, %s12
  $region7: #{out_conv_forward.3} parent=0 // loop_footer_branch
    %11 = sbr.rel target = $region3
  $region8: #{out_conv_forward.3} parent=0 // loop_exit
    _

// kernel: out_conv_forward.2
$region0: #{out_conv_forward.2}
  #allocation0 [shape = 'u32[]', space=smem, size = 0x4, offset = 0x4, fixed_abs, tag = 'smem constant byte address 0x4 - core index']
  #allocation1 [shape = 'u32[72,128]{1,0:T(1,128)}', space=vmem, size = 0x9000, scoped, tag = 'internal scratch']
  %s0 = inlined_call_operand.vmem [shape: bf16[2,18,18,128], index: 0, kind: input, shape index: {}, may-alias: {0,1,2}]
  %s1 = inlined_call_operand.vmem [shape: bf16[2,18,18,128], index: 1, kind: input, shape index: {}, may-alias: {0,1,2}]
  %s2 = inlined_call_operand.vmem [shape: bf16[2,18,18,128], index: 2, kind: input, shape index: {}, may-alias: {0,1,2}]
  %s3 = inlined_call_operand.vmem [shape: bf16[9,128,128], index: 3, kind: input, shape index: {}]
  %s4 = inlined_call_operand.vmem [shape: f32[2,16,16,128], index: 4, kind: output, shape index: {0}]
  %s5 = inlined_call_operand.vmem [shape: f32[1,128], index: 5, kind: output, shape index: {1}]
  %s6 = inlined_call_operand.vmem [shape: f32[1,128], index: 6, kind: output, shape index: {2}]
  %7 = xla_tuple %s4, %s5, %s6
  %s8 = sld [smem:[#allocation0]]
  $region69: #{out_conv_forward.2} parent=0
    _
  %s10 = ssub.s32 1, %s8
  %s11 = scalar_select 0, %s10, %s8
  loop: start=0, step=1, limit=34
  $region2: #{out_conv_forward.2} parent=0 // loop_pre_header
    _
  $region3: #{out_conv_forward.2} parent=0 // loop_header
    %s13 = sphi 0, %s17
    %p14 = scmp.ge.s32.totalorder %s13, 34
    %s20 = sphi 0, %s32
    %s21 = sphi 0, %s28
    %s22 = sphi 0, %s20
    %s23 = sphi 0, %s21
    %s24 = sphi 0, %s22
    %s25 = sphi 0, %s23
    %s37 = sphi 0, %s39
    %s40 = sphi 0, %s37
    %s41 = sphi 0, %s40
    %s57 = sphi 0, %s41
    %s67 = sphi 0, %s69
    %s70 = sphi 0, %s67
    %s71 = sphi 0, %s70
    %s87 = sphi 0, %s71
    %s97 = sphi 0, %s99
    %s100 = sphi 0, %s97
    %s101 = sphi 0, %s100
    %s117 = sphi 0, %s101
    %s121 = sphi 0, %s121
    %s123 = sphi 0, %s121
    %s124 = sphi 0, %s123
    %s138 = sphi 0, %s124
    %s146 = sphi 0, %s148
    %s149 = sphi 0, %s146
    %s150 = sphi 0, %s149
    %s166 = sphi 0, %s150
    %s170 = sphi 0, %s170
    %s172 = sphi 0, %s170
    %s173 = sphi 0, %s172
    %s187 = sphi 0, %s173
    %s191 = sphi 0, %s191
    %s193 = sphi 0, %s191
    %s194 = sphi 0, %s193
    %s208 = sphi 0, %s194
  $region4: #{out_conv_forward.2} parent=0 // loop_header_branch
    %16 = sbr.rel (%p14) target = $region8
  $region5: #{out_conv_forward.2} parent=0 // loop_body
    %s18 = ssub.s32 %s13, 1
    %s19 = ssub.s32 %s13, 2
    %s26 = sadd.s32 1, %s21
    %p27 = scmp.ge.s32.totalorder %s26, 16
    %s28 = scalar_select %p27, 0, %s26
    %s29 = sadd.s32 1, %s20
    %s30 = scalar_select %p27, %s29, %s20
    %p31 = scmp.ge.s32.totalorder %s30, 2
    %s32 = scalar_select %p31, 0, %s30
    %s33 = ssub.s32 %s20, %s32
    %s34 = ssub.s32 %s21, %s28
    %s35 = sor.u32 %s33, %s34
    %p36 = scmp.eq.s32.totalorder %s35, 0
    %s38 = sadd.s32 %s37, 1
    %s39 = scalar_select %p36, %s37, %s38
    %p42 = pneg %p36
    %p43 = scmp.eq.s32.totalorder %s13, 31
    %p44 = por %p42, %p43
    %p45 = scmp.ne.s32.totalorder %s37, %s40
    %p46 = scmp.eq.s32.totalorder %s13, 0
    %p47 = por %p45, %p46
    %p48 = scmp.ne.s32.totalorder %s37, %s40
    %p49 = scmp.eq.s32.totalorder %s18, 31
    %p50 = por %p48, %p49
    %p51 = scmp.ne.s32.totalorder %s40, %s41
    %p52 = scmp.eq.s32.totalorder %s18, 0
    %p53 = por %p51, %p52
    %p54 = scmp.ne.s32.totalorder %s40, %s41
    %p55 = scmp.eq.s32.totalorder %s19, 31
    %p56 = por %p54, %p55
    %p58 = scmp.ne.s32.totalorder %s41, %s57
    %p59 = scmp.eq.s32.totalorder %s19, 0
    %p60 = por %p58, %p59
    %s61 = sadd.s32 %s21, 1
    %s62 = sadd.s32 %s28, 1
    %s63 = ssub.s32 %s20, %s32
    %s64 = ssub.s32 %s61, %s62
    %s65 = sor.u32 %s63, %s64
    %p66 = scmp.eq.s32.totalorder %s65, 0
    %s68 = sadd.s32 %s67, 1
    %s69 = scalar_select %p66, %s67, %s68
    %p72 = pneg %p66
    %p73 = scmp.eq.s32.totalorder %s13, 31
    %p74 = por %p72, %p73
    %p75 = scmp.ne.s32.totalorder %s67, %s70
    %p76 = scmp.eq.s32.totalorder %s13, 0
    %p77 = por %p75, %p76
    %p78 = scmp.ne.s32.totalorder %s67, %s70
    %p79 = scmp.eq.s32.totalorder %s18, 31
    %p80 = por %p78, %p79
    %p81 = scmp.ne.s32.totalorder %s70, %s71
    %p82 = scmp.eq.s32.totalorder %s18, 0
    %p83 = por %p81, %p82
    %p84 = scmp.ne.s32.totalorder %s70, %s71
    %p85 = scmp.eq.s32.totalorder %s19, 31
    %p86 = por %p84, %p85
    %p88 = scmp.ne.s32.totalorder %s71, %s87
    %p89 = scmp.eq.s32.totalorder %s19, 0
    %p90 = por %p88, %p89
    %s91 = sadd.s32 %s21, 2
    %s92 = sadd.s32 %s28, 2
    %s93 = ssub.s32 %s20, %s32
    %s94 = ssub.s32 %s91, %s92
    %s95 = sor.u32 %s93, %s94
    %p96 = scmp.eq.s32.totalorder %s95, 0
    %s98 = sadd.s32 %s97, 1
    %s99 = scalar_select %p96, %s97, %s98
    %p102 = pneg %p96
    %p103 = scmp.eq.s32.totalorder %s13, 31
    %p104 = por %p102, %p103
    %p105 = scmp.ne.s32.totalorder %s97, %s100
    %p106 = scmp.eq.s32.totalorder %s13, 0
    %p107 = por %p105, %p106
    %p108 = scmp.ne.s32.totalorder %s97, %s100
    %p109 = scmp.eq.s32.totalorder %s18, 31
    %p110 = por %p108, %p109
    %p111 = scmp.ne.s32.totalorder %s100, %s101
    %p112 = scmp.eq.s32.totalorder %s18, 0
    %p113 = por %p111, %p112
    %p114 = scmp.ne.s32.totalorder %s100, %s101
    %p115 = scmp.eq.s32.totalorder %s19, 31
    %p116 = por %p114, %p115
    %p118 = scmp.ne.s32.totalorder %s101, %s117
    %p119 = scmp.eq.s32.totalorder %s19, 0
    %p120 = por %p118, %p119
    %s122 = sadd.s32 %s121, 1
    %p125 = scmp.eq.s32.totalorder %s13, 31
    %p126 = scmp.ne.s32.totalorder %s121, %s123
    %p127 = scmp.eq.s32.totalorder %s13, 0
    %p128 = por %p126, %p127
    %p129 = scmp.ne.s32.totalorder %s121, %s123
    %p130 = scmp.eq.s32.totalorder %s18, 31
    %p131 = por %p129, %p130
    %p132 = scmp.ne.s32.totalorder %s123, %s124
    %p133 = scmp.eq.s32.totalorder %s18, 0
    %p134 = por %p132, %p133
    %p135 = scmp.ne.s32.totalorder %s123, %s124
    %p136 = scmp.eq.s32.totalorder %s19, 31
    %p137 = por %p135, %p136
    %p139 = scmp.ne.s32.totalorder %s124, %s138
    %p140 = scmp.eq.s32.totalorder %s19, 0
    %p141 = por %p139, %p140
    %s142 = ssub.s32 %s20, %s32
    %s143 = ssub.s32 %s21, %s28
    %s144 = sor.u32 %s142, %s143
    %p145 = scmp.eq.s32.totalorder %s144, 0
    %s147 = sadd.s32 %s146, 1
    %s148 = scalar_select %p145, %s146, %s147
    %p151 = pneg %p145
    %p152 = scmp.eq.s32.totalorder %s13, 31
    %p153 = por %p151, %p152
    %p154 = scmp.ne.s32.totalorder %s146, %s149
    %p155 = scmp.eq.s32.totalorder %s13, 0
    %p156 = por %p154, %p155
    %p157 = scmp.ne.s32.totalorder %s146, %s149
    %p158 = scmp.eq.s32.totalorder %s18, 31
    %p159 = por %p157, %p158
    %p160 = scmp.ne.s32.totalorder %s149, %s150
    %p161 = scmp.eq.s32.totalorder %s18, 0
    %p162 = por %p160, %p161
    %p163 = scmp.ne.s32.totalorder %s149, %s150
    %p164 = scmp.eq.s32.totalorder %s19, 31
    %p165 = por %p163, %p164
    %p167 = scmp.ne.s32.totalorder %s150, %s166
    %p168 = scmp.eq.s32.totalorder %s19, 0
    %p169 = por %p167, %p168
    %s171 = sadd.s32 %s170, 1
    %p174 = scmp.eq.s32.totalorder %s13, 31
    %p175 = scmp.ne.s32.totalorder %s170, %s172
    %p176 = scmp.eq.s32.totalorder %s13, 0
    %p177 = por %p175, %p176
    %p178 = scmp.ne.s32.totalorder %s170, %s172
    %p179 = scmp.eq.s32.totalorder %s18, 31
    %p180 = por %p178, %p179
    %p181 = scmp.ne.s32.totalorder %s172, %s173
    %p182 = scmp.eq.s32.totalorder %s18, 0
    %p183 = por %p181, %p182
    %p184 = scmp.ne.s32.totalorder %s172, %s173
    %p185 = scmp.eq.s32.totalorder %s19, 31
    %p186 = por %p184, %p185
    %p188 = scmp.ne.s32.totalorder %s173, %s187
    %p189 = scmp.eq.s32.totalorder %s19, 0
    %p190 = por %p188, %p189
    %s192 = sadd.s32 %s191, 1
    %p195 = scmp.eq.s32.totalorder %s13, 31
    %p196 = scmp.ne.s32.totalorder %s191, %s193
    %p197 = scmp.eq.s32.totalorder %s13, 0
    %p198 = por %p196, %p197
    %p199 = scmp.ne.s32.totalorder %s191, %s193
    %p200 = scmp.eq.s32.totalorder %s18, 31
    %p201 = por %p199, %p200
    %p202 = scmp.ne.s32.totalorder %s193, %s194
    %p203 = scmp.eq.s32.totalorder %s18, 0
    %p204 = por %p202, %p203
    %p205 = scmp.ne.s32.totalorder %s193, %s194
    %p206 = scmp.eq.s32.totalorder %s19, 31
    %p207 = por %p205, %p206
    %p209 = scmp.ne.s32.totalorder %s194, %s208
    %p210 = scmp.eq.s32.totalorder %s19, 0
    %p211 = por %p209, %p210
    %p212 = scmp.le.s32.totalorder 1, %s13
    %p213 = scmp.lt.s32.totalorder %s13, 33
    %p214 = pnand %p212, %p213
    %p215 = pneg %p214
    // Predicated region
    $region9: #{out_conv_forward.2} parent=5 // pred_check
      _
    $region10: #{out_conv_forward.2} parent=5 // pred_check_branch
      %217 = sbr.rel (%p214) target = $region12
    $region11: #{out_conv_forward.2} parent=5 // pred_region
      %s218 = ssub.s32 %s13, 1
      // Predicated region
      $region13: #{out_conv_forward.2} parent=11 // pred_check
        %p219 = pneg %p134
      $region14: #{out_conv_forward.2} parent=11 // pred_check_branch
        %221 = sbr.rel (%p219) target = $region16
      $region15: #{out_conv_forward.2} parent=11 // pred_region
        _
      $region16: #{out_conv_forward.2} parent=11 // pred_fallthru
        _
    $region12: #{out_conv_forward.2} parent=5 // pred_fallthru
      _
    %p222 = scmp.lt.s32.totalorder %s13, 32
    // Predicated region
    $region17: #{out_conv_forward.2} parent=5 // pred_check
      %p223 = pneg %p222
    $region18: #{out_conv_forward.2} parent=5 // pred_check_branch
      %225 = sbr.rel (%p223) target = $region20
    $region19: #{out_conv_forward.2} parent=5 // pred_region
      // Predicated region
      $region21: #{out_conv_forward.2} parent=19 // pred_check
        %p226 = pneg %p47
      $region22: #{out_conv_forward.2} parent=19 // pred_check_branch
        %228 = sbr.rel (%p226) target = $region24
      $region23: #{out_conv_forward.2} parent=19 // pred_region
        %p229 = scmp.lt.s32.totalorder %s20, 1
        %s230 = scalar_select %p229, %s20, 1
        %p231 = scmp.lt.s32.totalorder %s21, 17
        %s232 = scalar_select %p231, %s21, 17
        %s233 = smul.addr %s232, 3
        %s234 = smul.addr %s230, 54
        %s235 = sadd.s32 %s233, %s234
        %s236 = smul.addr %s235, 4
        %s237 = scalar_lea.vmem %s0, %s236
      $region24: #{out_conv_forward.2} parent=19 // pred_fallthru
        _
      // Predicated region
      $region25: #{out_conv_forward.2} parent=19 // pred_check
        %p238 = pneg %p77
      $region26: #{out_conv_forward.2} parent=19 // pred_check_branch
        %240 = sbr.rel (%p238) target = $region28
      $region27: #{out_conv_forward.2} parent=19 // pred_region
        %s241 = sadd.s32 %s21, 1
        %p242 = scmp.lt.s32.totalorder %s20, 1
        %s243 = scalar_select %p242, %s20, 1
        %p244 = scmp.lt.s32.totalorder %s241, 17
        %s245 = scalar_select %p244, %s241, 17
        %s246 = smul.addr %s245, 3
        %s247 = smul.addr %s243, 54
        %s248 = sadd.s32 %s246, %s247
        %s249 = smul.addr %s248, 4
        %s250 = scalar_lea.vmem %s1, %s249
        %s251 = sadd.s32 %s21, 1
      $region28: #{out_conv_forward.2} parent=19 // pred_fallthru
        _
      // Predicated region
      $region29: #{out_conv_forward.2} parent=19 // pred_check
        %p252 = pneg %p107
      $region30: #{out_conv_forward.2} parent=19 // pred_check_branch
        %254 = sbr.rel (%p252) target = $region32
      $region31: #{out_conv_forward.2} parent=19 // pred_region
        %s255 = sadd.s32 %s21, 2
        %p256 = scmp.lt.s32.totalorder %s20, 1
        %s257 = scalar_select %p256, %s20, 1
        %p258 = scmp.lt.s32.totalorder %s255, 17
        %s259 = scalar_select %p258, %s255, 17
        %s260 = smul.addr %s259, 3
        %s261 = smul.addr %s257, 54
        %s262 = sadd.s32 %s260, %s261
        %s263 = smul.addr %s262, 4
        %s264 = scalar_lea.vmem %s2, %s263
        %s265 = sadd.s32 %s21, 2
      $region32: #{out_conv_forward.2} parent=19 // pred_fallthru
        _
    $region20: #{out_conv_forward.2} parent=5 // pred_fallthru
      _
    %p266 = scmp.le.s32.totalorder 1, %s13
    %p267 = scmp.lt.s32.totalorder %s13, 33
    %p268 = pnand %p266, %p267
    %p269 = pneg %p268
    // Predicated region
    $region33: #{out_conv_forward.2} parent=5 // pred_check
      _
    $region34: #{out_conv_forward.2} parent=5 // pred_check_branch
      %271 = sbr.rel (%p268) target = $region36
    $region35: #{out_conv_forward.2} parent=5 // pred_region
      %s272 = ssub.s32 %s13, 1
      %p273 = scmp.lt.s32.totalorder %s22, 1
      %s274 = scalar_select %p273, %s22, 1
      %p275 = scmp.lt.s32.totalorder %s23, 17
      %s276 = scalar_select %p275, %s23, 17
      %s277 = smul.addr %s276, 3
      %s278 = smul.addr %s274, 54
      %s279 = sadd.s32 %s277, %s278
      %s280 = smul.addr %s279, 4
      %s281 = scalar_lea.vmem %s0, %s280
      %p282 = pneg %p53
      %p283 = pneg %p50
      %s284 = sadd.s32 %s23, 1
      %p285 = scmp.lt.s32.totalorder %s22, 1
      %s286 = scalar_select %p285, %s22, 1
      %p287 = scmp.lt.s32.totalorder %s284, 17
      %s288 = scalar_select %p287, %s284, 17
      %s289 = smul.addr %s288, 3
      %s290 = smul.addr %s286, 54
      %s291 = sadd.s32 %s289, %s290
      %s292 = smul.addr %s291, 4
      %s293 = scalar_lea.vmem %s1, %s292
      %p294 = pneg %p83
      %p295 = pneg %p80
      %s296 = sadd.s32 %s23, 2
      %p297 = scmp.lt.s32.totalorder %s22, 1
      %s298 = scalar_select %p297, %s22, 1
      %p299 = scmp.lt.s32.totalorder %s296, 17
      %s300 = scalar_select %p299, %s296, 17
      %s301 = smul.addr %s300, 3
      %s302 = smul.addr %s298, 54
      %s303 = sadd.s32 %s301, %s302
      %s304 = smul.addr %s303, 4
      %s305 = scalar_lea.vmem %s2, %s304
      %p306 = pneg %p113
      %p307 = pneg %p110
      %p308 = pneg %p134
      %p309 = pneg %p131
      %p310 = pneg %p162
      %p311 = pneg %p159
      %p312 = scmp.lt.s32.totalorder %s22, 1
      %s313 = scalar_select %p312, %s22, 1
      %p314 = scmp.lt.s32.totalorder %s23, 15
      %s315 = scalar_select %p314, %s23, 15
      %s316 = smul.addr %s315, 2
      %s317 = smul.addr %s313, 32
      %s318 = sadd.s32 %s316, %s317
      %s319 = smul.addr %s318, 8
      %s320 = scalar_lea.vmem %s4, %s319
      %p321 = pneg %p183
      %p322 = pneg %p180
      %p323 = pneg %p204
      %p324 = pneg %p201
      %p325 = scmp.lt.s32.totalorder %s22, 1
      %s326 = scalar_select %p325, %s22, 1
      %p327 = scmp.lt.s32.totalorder %s23, 17
      %s328 = scalar_select %p327, %s23, 17
      %s329 = smul.addr %s328, 3
      %s330 = smul.addr %s326, 54
      %s331 = sadd.s32 %s329, %s330
      %s332 = smul.addr %s331, 4
      %s333 = scalar_lea.vmem %s0, %s332
      %s334 = sadd.s32 %s23, 1
      %p335 = scmp.lt.s32.totalorder %s22, 1
      %s336 = scalar_select %p335, %s22, 1
      %p337 = scmp.lt.s32.totalorder %s334, 17
      %s338 = scalar_select %p337, %s334, 17
      %s339 = smul.addr %s338, 3
      %s340 = smul.addr %s336, 54
      %s341 = sadd.s32 %s339, %s340
      %s342 = smul.addr %s341, 4
      %s343 = scalar_lea.vmem %s1, %s342
      %s344 = sadd.s32 %s23, 1
      %s345 = sadd.s32 %s23, 2
      %p346 = scmp.lt.s32.totalorder %s22, 1
      %s347 = scalar_select %p346, %s22, 1
      %p348 = scmp.lt.s32.totalorder %s345, 17
      %s349 = scalar_select %p348, %s345, 17
      %s350 = smul.addr %s349, 3
      %s351 = smul.addr %s347, 54
      %s352 = sadd.s32 %s350, %s351
      %s353 = smul.addr %s352, 4
      %s354 = scalar_lea.vmem %s2, %s353
      %s355 = sadd.s32 %s23, 2
      %p356 = scmp.lt.s32.totalorder %s22, 1
      %s357 = scalar_select %p356, %s22, 1
      %p358 = scmp.lt.s32.totalorder %s23, 15
      %s359 = scalar_select %p358, %s23, 15
      %s360 = smul.addr %s359, 2
      %s361 = smul.addr %s357, 32
      %s362 = sadd.s32 %s360, %s361
      %s363 = smul.addr %s362, 8
      %s364 = scalar_lea.vmem %s4, %s363
      %v365 = vld [vmem:[%s333] sm:$0xf]
      %v366 = vld [vmem:[%s333 + $0x4] sm:$0xf]
      %v367 = vld [vmem:[%s333 + $0x8] sm:$0x1]
      %v368 = vld [vmem:[%s343] sm:$0xf]
      %v369 = vld [vmem:[%s343 + $0x4] sm:$0xf]
      %v370 = vld [vmem:[%s343 + $0x8] sm:$0x1]
      %v371 = vld [vmem:[%s354] sm:$0xf]
      %v372 = vld [vmem:[%s354 + $0x4] sm:$0xf]
      %v373 = vld [vmem:[%s354 + $0x8] sm:$0x1]
      %v374 = vld [vmem:[%s3] sm:$0xf]
      %v375 = vld [vmem:[%s3 + $0x4] sm:$0xf]
      %v376 = vld [vmem:[%s3 + $0x8] sm:$0xf]
      %v377 = vld [vmem:[%s3 + $0xc] sm:$0xf]
      %v378 = vld [vmem:[%s3 + $0x10] sm:$0xf]
      %v379 = vld [vmem:[%s3 + $0x14] sm:$0xf]
      %v380 = vld [vmem:[%s3 + $0x18] sm:$0xf]
      %v381 = vld [vmem:[%s3 + $0x1c] sm:$0xf]
      %v382 = vld [vmem:[%s3 + $0x20] sm:$0xf]
      %v383 = vld [vmem:[%s3 + $0x24] sm:$0xf]
      %v384 = vld [vmem:[%s3 + $0x28] sm:$0xf]
      %v385 = vld [vmem:[%s3 + $0x2c] sm:$0xf]
      %v386 = vld [vmem:[%s3 + $0x30] sm:$0xf]
      %v387 = vld [vmem:[%s3 + $0x34] sm:$0xf]
      %v388 = vld [vmem:[%s3 + $0x38] sm:$0xf]
      %v389 = vld [vmem:[%s3 + $0x3c] sm:$0xf]
      %s390 = scalar_lea.vmem %s3, 64
      %v391 = vld [vmem:[%s390] sm:$0xf]
      %v392 = vld [vmem:[%s390 + $0x4] sm:$0xf]
      %v393 = vld [vmem:[%s390 + $0x8] sm:$0xf]
      %v394 = vld [vmem:[%s390 + $0xc] sm:$0xf]
      %v395 = vld [vmem:[%s390 + $0x10] sm:$0xf]
      %v396 = vld [vmem:[%s390 + $0x14] sm:$0xf]
      %v397 = vld [vmem:[%s390 + $0x18] sm:$0xf]
      %v398 = vld [vmem:[%s390 + $0x1c] sm:$0xf]
      %v399 = vld [vmem:[%s390 + $0x20] sm:$0xf]
      %v400 = vld [vmem:[%s390 + $0x24] sm:$0xf]
      %v401 = vld [vmem:[%s390 + $0x28] sm:$0xf]
      %v402 = vld [vmem:[%s390 + $0x2c] sm:$0xf]
      %v403 = vld [vmem:[%s390 + $0x30] sm:$0xf]
      %v404 = vld [vmem:[%s390 + $0x34] sm:$0xf]
      %v405 = vld [vmem:[%s390 + $0x38] sm:$0xf]
      %v406 = vld [vmem:[%s390 + $0x3c] sm:$0xf]
      %v410 = vunpack.c.l.b16 %v365
      %v411 = vunpack.c.l.b16 %v366
      %v412 = vunpack.c.l.b16 %v367
      %v413 = vpack.c.b16 %v411, %v410
      %v414 = vpack.c.b16 %v412, %v412
      %vm415 = vsmask.f32 7424
      %v417 = vshrl.u32 %v413, 16
      %v419 = vshll.u32 %v413, 16
      %v421 = vrot.slane %v419, 1
      %v422 = vor.u32 %v417, %v421
      %v424 = vshll.u32 %v414, 16
      %v426 = vrot.slane %v424, 1
      %v427 = vsel %vm415, %v422, %v426
      %v445 = vunpack.c.l.b16 %v391
      %v446 = vunpack.c.l.b16 %v392
      %v447 = vunpack.c.l.b16 %v393
      %v448 = vunpack.c.l.b16 %v394
      %v449 = vunpack.c.l.b16 %v395
      %v450 = vunpack.c.l.b16 %v396
      %v451 = vunpack.c.l.b16 %v397
      %v452 = vunpack.c.l.b16 %v398
      %v453 = vunpack.c.l.b16 %v399
      %v454 = vunpack.c.l.b16 %v400
      %v455 = vunpack.c.l.b16 %v401
      %v456 = vunpack.c.l.b16 %v402
      %v457 = vunpack.c.l.b16 %v403
      %v458 = vunpack.c.l.b16 %v404
      %v459 = vunpack.c.l.b16 %v405
      %v460 = vunpack.c.l.b16 %v406
      %v461 = vpack.c.b16 %v446, %v445
      %v462 = vpack.c.b16 %v448, %v447
      %v463 = vpack.c.b16 %v450, %v449
      %v464 = vpack.c.b16 %v452, %v451
      %v465 = vpack.c.b16 %v454, %v453
      %v466 = vpack.c.b16 %v456, %v455
      %v467 = vpack.c.b16 %v458, %v457
      %v468 = vpack.c.b16 %v460, %v459
      %477 = vmatpush.bf16.msra.mxu0 %v468
      %478 = vmatpush.bf16.msra.mxu0 %v467
      %479 = vmatpush.bf16.msra.mxu0 %v466
      %480 = vmatpush.bf16.msra.mxu0 %v465
      %481 = vmatpush.bf16.msra.mxu0 %v464
      %482 = vmatpush.bf16.msra.mxu0 %v463
      %483 = vmatpush.bf16.msra.mxu0 %v462
      %484 = vmatpush.bf16.msra.mxu0 %v461
      %485 = vmatmul.bf16.gmra.mxu0 %v427
      %v486 = vpop.f32.mrf.mxu0
      %v487 = vadd.f32 0.0, %v486
      %v488 = vpop.f32.mrf.mxu0
      %v489 = vadd.f32 0.0, %v488
      %490 = vdwg.mxu0
      %v508 = vunpack.c.l.b16 %v374
      %v509 = vunpack.c.l.b16 %v375
      %v510 = vunpack.c.l.b16 %v376
      %v511 = vunpack.c.l.b16 %v377
      %v512 = vunpack.c.l.b16 %v378
      %v513 = vunpack.c.l.b16 %v379
      %v514 = vunpack.c.l.b16 %v380
      %v515 = vunpack.c.l.b16 %v381
      %v516 = vunpack.c.l.b16 %v382
      %v517 = vunpack.c.l.b16 %v383
      %v518 = vunpack.c.l.b16 %v384
      %v519 = vunpack.c.l.b16 %v385
      %v520 = vunpack.c.l.b16 %v386
      %v521 = vunpack.c.l.b16 %v387
      %v522 = vunpack.c.l.b16 %v388
      %v523 = vunpack.c.l.b16 %v389
      %v524 = vpack.c.b16 %v509, %v508
      %v525 = vpack.c.b16 %v511, %v510
      %v526 = vpack.c.b16 %v513, %v512
      %v527 = vpack.c.b16 %v515, %v514
      %v528 = vpack.c.b16 %v517, %v516
      %v529 = vpack.c.b16 %v519, %v518
      %v530 = vpack.c.b16 %v521, %v520
      %v531 = vpack.c.b16 %v523, %v522
      %540 = vmatpush.bf16.msra.mxu0 %v531
      %541 = vmatpush.bf16.msra.mxu0 %v530
      %542 = vmatpush.bf16.msra.mxu0 %v529
      %543 = vmatpush.bf16.msra.mxu0 %v528
      %544 = vmatpush.bf16.msra.mxu0 %v527
      %545 = vmatpush.bf16.msra.mxu0 %v526
      %546 = vmatpush.bf16.msra.mxu0 %v525
      %547 = vmatpush.bf16.msra.mxu0 %v524
      %548 = vmatmul.bf16.gmra.mxu0 %v413
      %v549 = vpop.f32.mrf.mxu0
      %v550 = vadd.f32 %v487, %v549
      %v551 = vpop.f32.mrf.mxu0
      %v552 = vadd.f32 %v489, %v551
      %553 = vdwg.mxu0
      %s554 = scalar_lea.vmem %s3, 128
      %v555 = vld [vmem:[%s554] sm:$0xf]
      %v556 = vld [vmem:[%s554 + $0x4] sm:$0xf]
      %v557 = vld [vmem:[%s554 + $0x8] sm:$0xf]
      %v558 = vld [vmem:[%s554 + $0xc] sm:$0xf]
      %v559 = vld [vmem:[%s554 + $0x10] sm:$0xf]
      %v560 = vld [vmem:[%s554 + $0x14] sm:$0xf]
      %v561 = vld [vmem:[%s554 + $0x18] sm:$0xf]
      %v562 = vld [vmem:[%s554 + $0x1c] sm:$0xf]
      %v563 = vld [vmem:[%s554 + $0x20] sm:$0xf]
      %v564 = vld [vmem:[%s554 + $0x24] sm:$0xf]
      %v565 = vld [vmem:[%s554 + $0x28] sm:$0xf]
      %v566 = vld [vmem:[%s554 + $0x2c] sm:$0xf]
      %v567 = vld [vmem:[%s554 + $0x30] sm:$0xf]
      %v568 = vld [vmem:[%s554 + $0x34] sm:$0xf]
      %v569 = vld [vmem:[%s554 + $0x38] sm:$0xf]
      %v570 = vld [vmem:[%s554 + $0x3c] sm:$0xf]
      %vm571 = vcmask 1046528
      %v572 = vrot.slane %v413, 1
      %v573 = vrot.slane %v414, 1
      %v574 = vsel %vm571, %v572, %v573
      %v592 = vunpack.c.l.b16 %v555
      %v593 = vunpack.c.l.b16 %v556
      %v594 = vunpack.c.l.b16 %v557
      %v595 = vunpack.c.l.b16 %v558
      %v596 = vunpack.c.l.b16 %v559
      %v597 = vunpack.c.l.b16 %v560
      %v598 = vunpack.c.l.b16 %v561
      %v599 = vunpack.c.l.b16 %v562
      %v600 = vunpack.c.l.b16 %v563
      %v601 = vunpack.c.l.b16 %v564
      %v602 = vunpack.c.l.b16 %v565
      %v603 = vunpack.c.l.b16 %v566
      %v604 = vunpack.c.l.b16 %v567
      %v605 = vunpack.c.l.b16 %v568
      %v606 = vunpack.c.l.b16 %v569
      %v607 = vunpack.c.l.b16 %v570
      %v608 = vpack.c.b16 %v593, %v592
      %v609 = vpack.c.b16 %v595, %v594
      %v610 = vpack.c.b16 %v597, %v596
      %v611 = vpack.c.b16 %v599, %v598
      %v612 = vpack.c.b16 %v601, %v600
      %v613 = vpack.c.b16 %v603, %v602
      %v614 = vpack.c.b16 %v605, %v604
      %v615 = vpack.c.b16 %v607, %v606
      %624 = vmatpush.bf16.msra.mxu0 %v615
      %625 = vmatpush.bf16.msra.mxu0 %v614
      %626 = vmatpush.bf16.msra.mxu0 %v613
      %627 = vmatpush.bf16.msra.mxu0 %v612
      %628 = vmatpush.bf16.msra.mxu0 %v611
      %629 = vmatpush.bf16.msra.mxu0 %v610
      %630 = vmatpush.bf16.msra.mxu0 %v609
      %631 = vmatpush.bf16.msra.mxu0 %v608
      %632 = vmatmul.bf16.gmra.mxu0 %v574
      %v633 = vpop.f32.mrf.mxu0
      %v634 = vadd.f32 0.0, %v633
      %v635 = vpop.f32.mrf.mxu0
      %v636 = vadd.f32 0.0, %v635
      %637 = vdwg.mxu0
      %v638 = vadd.f32 %v550, %v634
      %v639 = vadd.f32 %v552, %v636
      %s640 = scalar_lea.vmem %s3, 192
      %v641 = vld [vmem:[%s640] sm:$0xf]
      %v642 = vld [vmem:[%s640 + $0x4] sm:$0xf]
      %v643 = vld [vmem:[%s640 + $0x8] sm:$0xf]
      %v644 = vld [vmem:[%s640 + $0xc] sm:$0xf]
      %v645 = vld [vmem:[%s640 + $0x10] sm:$0xf]
      %v646 = vld [vmem:[%s640 + $0x14] sm:$0xf]
      %v647 = vld [vmem:[%s640 + $0x18] sm:$0xf]
      %v648 = vld [vmem:[%s640 + $0x1c] sm:$0xf]
      %v649 = vld [vmem:[%s640 + $0x20] sm:$0xf]
      %v650 = vld [vmem:[%s640 + $0x24] sm:$0xf]
      %v651 = vld [vmem:[%s640 + $0x28] sm:$0xf]
      %v652 = vld [vmem:[%s640 + $0x2c] sm:$0xf]
      %v653 = vld [vmem:[%s640 + $0x30] sm:$0xf]
      %v654 = vld [vmem:[%s640 + $0x34] sm:$0xf]
      %v655 = vld [vmem:[%s640 + $0x38] sm:$0xf]
      %v656 = vld [vmem:[%s640 + $0x3c] sm:$0xf]
      %v659 = vunpack.c.l.b16 %v368
      %v660 = vunpack.c.l.b16 %v369
      %v661 = vpack.c.b16 %v660, %v659
      %v679 = vunpack.c.l.b16 %v641
      %v680 = vunpack.c.l.b16 %v642
      %v681 = vunpack.c.l.b16 %v643
      %v682 = vunpack.c.l.b16 %v644
      %v683 = vunpack.c.l.b16 %v645
      %v684 = vunpack.c.l.b16 %v646
      %v685 = vunpack.c.l.b16 %v647
      %v686 = vunpack.c.l.b16 %v648
      %v687 = vunpack.c.l.b16 %v649
      %v688 = vunpack.c.l.b16 %v650
      %v689 = vunpack.c.l.b16 %v651
      %v690 = vunpack.c.l.b16 %v652
      %v691 = vunpack.c.l.b16 %v653
      %v692 = vunpack.c.l.b16 %v654
      %v693 = vunpack.c.l.b16 %v655
      %v694 = vunpack.c.l.b16 %v656
      %v695 = vpack.c.b16 %v680, %v679
      %v696 = vpack.c.b16 %v682, %v681
      %v697 = vpack.c.b16 %v684, %v683
      %v698 = vpack.c.b16 %v686, %v685
      %v699 = vpack.c.b16 %v688, %v687
      %v700 = vpack.c.b16 %v690, %v689
      %v701 = vpack.c.b16 %v692, %v691
      %v702 = vpack.c.b16 %v694, %v693
      %711 = vmatpush.bf16.msra.mxu0 %v702
      %712 = vmatpush.bf16.msra.mxu0 %v701
      %713 = vmatpush.bf16.msra.mxu0 %v700
      %714 = vmatpush.bf16.msra.mxu0 %v699
      %715 = vmatpush.bf16.msra.mxu0 %v698
      %716 = vmatpush.bf16.msra.mxu0 %v697
      %717 = vmatpush.bf16.msra.mxu0 %v696
      %718 = vmatpush.bf16.msra.mxu0 %v695
      %719 = vmatmul.bf16.gmra.mxu0 %v661
      %v720 = vpop.f32.mrf.mxu0
      %v721 = vadd.f32 0.0, %v720
      %v722 = vpop.f32.mrf.mxu0
      %v723 = vadd.f32 0.0, %v722
      %724 = vdwg.mxu0
      %v725 = vadd.f32 %v638, %v721
      %v726 = vadd.f32 %v639, %v723
      %s727 = scalar_lea.vmem %s3, 256
      %v728 = vld [vmem:[%s727] sm:$0xf]
      %v729 = vld [vmem:[%s727 + $0x4] sm:$0xf]
      %v730 = vld [vmem:[%s727 + $0x8] sm:$0xf]
      %v731 = vld [vmem:[%s727 + $0xc] sm:$0xf]
      %v732 = vld [vmem:[%s727 + $0x10] sm:$0xf]
      %v733 = vld [vmem:[%s727 + $0x14] sm:$0xf]
      %v734 = vld [vmem:[%s727 + $0x18] sm:$0xf]
      %v735 = vld [vmem:[%s727 + $0x1c] sm:$0xf]
      %v736 = vld [vmem:[%s727 + $0x20] sm:$0xf]
      %v737 = vld [vmem:[%s727 + $0x24] sm:$0xf]
      %v738 = vld [vmem:[%s727 + $0x28] sm:$0xf]
      %v739 = vld [vmem:[%s727 + $0x2c] sm:$0xf]
      %v740 = vld [vmem:[%s727 + $0x30] sm:$0xf]
      %v741 = vld [vmem:[%s727 + $0x34] sm:$0xf]
      %v742 = vld [vmem:[%s727 + $0x38] sm:$0xf]
      %v743 = vld [vmem:[%s727 + $0x3c] sm:$0xf]
      %v745 = vunpack.c.l.b16 %v370
      %v746 = vpack.c.b16 %v745, %v745
      %v748 = vshrl.u32 %v661, 16
      %v750 = vshll.u32 %v661, 16
      %v752 = vrot.slane %v750, 1
      %v753 = vor.u32 %v748, %v752
      %v755 = vshll.u32 %v746, 16
      %v757 = vrot.slane %v755, 1
      %v758 = vsel %vm415, %v753, %v757
      %v776 = vunpack.c.l.b16 %v728
      %v777 = vunpack.c.l.b16 %v729
      %v778 = vunpack.c.l.b16 %v730
      %v779 = vunpack.c.l.b16 %v731
      %v780 = vunpack.c.l.b16 %v732
      %v781 = vunpack.c.l.b16 %v733
      %v782 = vunpack.c.l.b16 %v734
      %v783 = vunpack.c.l.b16 %v735
      %v784 = vunpack.c.l.b16 %v736
      %v785 = vunpack.c.l.b16 %v737
      %v786 = vunpack.c.l.b16 %v738
      %v787 = vunpack.c.l.b16 %v739
      %v788 = vunpack.c.l.b16 %v740
      %v789 = vunpack.c.l.b16 %v741
      %v790 = vunpack.c.l.b16 %v742
      %v791 = vunpack.c.l.b16 %v743
      %v792 = vpack.c.b16 %v777, %v776
      %v793 = vpack.c.b16 %v779, %v778
      %v794 = vpack.c.b16 %v781, %v780
      %v795 = vpack.c.b16 %v783, %v782
      %v796 = vpack.c.b16 %v785, %v784
      %v797 = vpack.c.b16 %v787, %v786
      %v798 = vpack.c.b16 %v789, %v788
      %v799 = vpack.c.b16 %v791, %v790
      %808 = vmatpush.bf16.msra.mxu0 %v799
      %809 = vmatpush.bf16.msra.mxu0 %v798
      %810 = vmatpush.bf16.msra.mxu0 %v797
      %811 = vmatpush.bf16.msra.mxu0 %v796
      %812 = vmatpush.bf16.msra.mxu0 %v795
      %813 = vmatpush.bf16.msra.mxu0 %v794
      %814 = vmatpush.bf16.msra.mxu0 %v793
      %815 = vmatpush.bf16.msra.mxu0 %v792
      %816 = vmatmul.bf16.gmra.mxu0 %v758
      %v817 = vpop.f32.mrf.mxu0
      %v818 = vadd.f32 0.0, %v817
      %v819 = vpop.f32.mrf.mxu0
      %v820 = vadd.f32 0.0, %v819
      %821 = vdwg.mxu0
      %v822 = vadd.f32 %v725, %v818
      %v823 = vadd.f32 %v726, %v820
      %s824 = scalar_lea.vmem %s3, 320
      %v825 = vld [vmem:[%s824] sm:$0xf]
      %v826 = vld [vmem:[%s824 + $0x4] sm:$0xf]
      %v827 = vld [vmem:[%s824 + $0x8] sm:$0xf]
      %v828 = vld [vmem:[%s824 + $0xc] sm:$0xf]
      %v829 = vld [vmem:[%s824 + $0x10] sm:$0xf]
      %v830 = vld [vmem:[%s824 + $0x14] sm:$0xf]
      %v831 = vld [vmem:[%s824 + $0x18] sm:$0xf]
      %v832 = vld [vmem:[%s824 + $0x1c] sm:$0xf]
      %v833 = vld [vmem:[%s824 + $0x20] sm:$0xf]
      %v834 = vld [vmem:[%s824 + $0x24] sm:$0xf]
      %v835 = vld [vmem:[%s824 + $0x28] sm:$0xf]
      %v836 = vld [vmem:[%s824 + $0x2c] sm:$0xf]
      %v837 = vld [vmem:[%s824 + $0x30] sm:$0xf]
      %v838 = vld [vmem:[%s824 + $0x34] sm:$0xf]
      %v839 = vld [vmem:[%s824 + $0x38] sm:$0xf]
      %v840 = vld [vmem:[%s824 + $0x3c] sm:$0xf]
      %v841 = vrot.slane %v661, 1
      %v842 = vrot.slane %v746, 1
      %v843 = vsel %vm571, %v841, %v842
      %v861 = vunpack.c.l.b16 %v825
      %v862 = vunpack.c.l.b16 %v826
      %v863 = vunpack.c.l.b16 %v827
      %v864 = vunpack.c.l.b16 %v828
      %v865 = vunpack.c.l.b16 %v829
      %v866 = vunpack.c.l.b16 %v830
      %v867 = vunpack.c.l.b16 %v831
      %v868 = vunpack.c.l.b16 %v832
      %v869 = vunpack.c.l.b16 %v833
      %v870 = vunpack.c.l.b16 %v834
      %v871 = vunpack.c.l.b16 %v835
      %v872 = vunpack.c.l.b16 %v836
      %v873 = vunpack.c.l.b16 %v837
      %v874 = vunpack.c.l.b16 %v838
      %v875 = vunpack.c.l.b16 %v839
      %v876 = vunpack.c.l.b16 %v840
      %v877 = vpack.c.b16 %v862, %v861
      %v878 = vpack.c.b16 %v864, %v863
      %v879 = vpack.c.b16 %v866, %v865
      %v880 = vpack.c.b16 %v868, %v867
      %v881 = vpack.c.b16 %v870, %v869
      %v882 = vpack.c.b16 %v872, %v871
      %v883 = vpack.c.b16 %v874, %v873
      %v884 = vpack.c.b16 %v876, %v875
      %893 = vmatpush.bf16.msra.mxu0 %v884
      %894 = vmatpush.bf16.msra.mxu0 %v883
      %895 = vmatpush.bf16.msra.mxu0 %v882
      %896 = vmatpush.bf16.msra.mxu0 %v881
      %897 = vmatpush.bf16.msra.mxu0 %v880
      %898 = vmatpush.bf16.msra.mxu0 %v879
      %899 = vmatpush.bf16.msra.mxu0 %v878
      %900 = vmatpush.bf16.msra.mxu0 %v877
      %901 = vmatmul.bf16.gmra.mxu0 %v843
      %v902 = vpop.f32.mrf.mxu0
      %v903 = vadd.f32 0.0, %v902
      %v904 = vpop.f32.mrf.mxu0
      %v905 = vadd.f32 0.0, %v904
      %906 = vdwg.mxu0
      %v907 = vadd.f32 %v822, %v903
      %v908 = vadd.f32 %v823, %v905
      %s909 = scalar_lea.vmem %s3, 384
      %v910 = vld [vmem:[%s909] sm:$0xf]
      %v911 = vld [vmem:[%s909 + $0x4] sm:$0xf]
      %v912 = vld [vmem:[%s909 + $0x8] sm:$0xf]
      %v913 = vld [vmem:[%s909 + $0xc] sm:$0xf]
      %v914 = vld [vmem:[%s909 + $0x10] sm:$0xf]
      %v915 = vld [vmem:[%s909 + $0x14] sm:$0xf]
      %v916 = vld [vmem:[%s909 + $0x18] sm:$0xf]
      %v917 = vld [vmem:[%s909 + $0x1c] sm:$0xf]
      %v918 = vld [vmem:[%s909 + $0x20] sm:$0xf]
      %v919 = vld [vmem:[%s909 + $0x24] sm:$0xf]
      %v920 = vld [vmem:[%s909 + $0x28] sm:$0xf]
      %v921 = vld [vmem:[%s909 + $0x2c] sm:$0xf]
      %v922 = vld [vmem:[%s909 + $0x30] sm:$0xf]
      %v923 = vld [vmem:[%s909 + $0x34] sm:$0xf]
      %v924 = vld [vmem:[%s909 + $0x38] sm:$0xf]
      %v925 = vld [vmem:[%s909 + $0x3c] sm:$0xf]
      %v928 = vunpack.c.l.b16 %v371
      %v929 = vunpack.c.l.b16 %v372
      %v930 = vpack.c.b16 %v929, %v928
      %v948 = vunpack.c.l.b16 %v910
      %v949 = vunpack.c.l.b16 %v911
      %v950 = vunpack.c.l.b16 %v912
      %v951 = vunpack.c.l.b16 %v913
      %v952 = vunpack.c.l.b16 %v914
      %v953 = vunpack.c.l.b16 %v915
      %v954 = vunpack.c.l.b16 %v916
      %v955 = vunpack.c.l.b16 %v917
      %v956 = vunpack.c.l.b16 %v918
      %v957 = vunpack.c.l.b16 %v919
      %v958 = vunpack.c.l.b16 %v920
      %v959 = vunpack.c.l.b16 %v921
      %v960 = vunpack.c.l.b16 %v922
      %v961 = vunpack.c.l.b16 %v923
      %v962 = vunpack.c.l.b16 %v924
      %v963 = vunpack.c.l.b16 %v925
      %v964 = vpack.c.b16 %v949, %v948
      %v965 = vpack.c.b16 %v951, %v950
      %v966 = vpack.c.b16 %v953, %v952
      %v967 = vpack.c.b16 %v955, %v954
      %v968 = vpack.c.b16 %v957, %v956
      %v969 = vpack.c.b16 %v959, %v958
      %v970 = vpack.c.b16 %v961, %v960
      %v971 = vpack.c.b16 %v963, %v962
      %980 = vmatpush.bf16.msra.mxu0 %v971
      %981 = vmatpush.bf16.msra.mxu0 %v970
      %982 = vmatpush.bf16.msra.mxu0 %v969
      %983 = vmatpush.bf16.msra.mxu0 %v968
      %984 = vmatpush.bf16.msra.mxu0 %v967
      %985 = vmatpush.bf16.msra.mxu0 %v966
      %986 = vmatpush.bf16.msra.mxu0 %v965
      %987 = vmatpush.bf16.msra.mxu0 %v964
      %988 = vmatmul.bf16.gmra.mxu0 %v930
      %v989 = vpop.f32.mrf.mxu0
      %v990 = vadd.f32 0.0, %v989
      %v991 = vpop.f32.mrf.mxu0
      %v992 = vadd.f32 0.0, %v991
      %993 = vdwg.mxu0
      %v994 = vadd.f32 %v907, %v990
      %v995 = vadd.f32 %v908, %v992
      %s996 = scalar_lea.vmem %s3, 448
      %v997 = vld [vmem:[%s996] sm:$0xf]
      %v998 = vld [vmem:[%s996 + $0x4] sm:$0xf]
      %v999 = vld [vmem:[%s996 + $0x8] sm:$0xf]
      %v1000 = vld [vmem:[%s996 + $0xc] sm:$0xf]
      %v1001 = vld [vmem:[%s996 + $0x10] sm:$0xf]
      %v1002 = vld [vmem:[%s996 + $0x14] sm:$0xf]
      %v1003 = vld [vmem:[%s996 + $0x18] sm:$0xf]
      %v1004 = vld [vmem:[%s996 + $0x1c] sm:$0xf]
      %v1005 = vld [vmem:[%s996 + $0x20] sm:$0xf]
      %v1006 = vld [vmem:[%s996 + $0x24] sm:$0xf]
      %v1007 = vld [vmem:[%s996 + $0x28] sm:$0xf]
      %v1008 = vld [vmem:[%s996 + $0x2c] sm:$0xf]
      %v1009 = vld [vmem:[%s996 + $0x30] sm:$0xf]
      %v1010 = vld [vmem:[%s996 + $0x34] sm:$0xf]
      %v1011 = vld [vmem:[%s996 + $0x38] sm:$0xf]
      %v1012 = vld [vmem:[%s996 + $0x3c] sm:$0xf]
      %v1014 = vunpack.c.l.b16 %v373
      %v1015 = vpack.c.b16 %v1014, %v1014
      %v1017 = vshrl.u32 %v930, 16
      %v1019 = vshll.u32 %v930, 16
      %v1021 = vrot.slane %v1019, 1
      %v1022 = vor.u32 %v1017, %v1021
      %v1024 = vshll.u32 %v1015, 16
      %v1026 = vrot.slane %v1024, 1
      %v1027 = vsel %vm415, %v1022, %v1026
      %v1045 = vunpack.c.l.b16 %v997
      %v1046 = vunpack.c.l.b16 %v998
      %v1047 = vunpack.c.l.b16 %v999
      %v1048 = vunpack.c.l.b16 %v1000
      %v1049 = vunpack.c.l.b16 %v1001
      %v1050 = vunpack.c.l.b16 %v1002
      %v1051 = vunpack.c.l.b16 %v1003
      %v1052 = vunpack.c.l.b16 %v1004
      %v1053 = vunpack.c.l.b16 %v1005
      %v1054 = vunpack.c.l.b16 %v1006
      %v1055 = vunpack.c.l.b16 %v1007
      %v1056 = vunpack.c.l.b16 %v1008
      %v1057 = vunpack.c.l.b16 %v1009
      %v1058 = vunpack.c.l.b16 %v1010
      %v1059 = vunpack.c.l.b16 %v1011
      %v1060 = vunpack.c.l.b16 %v1012
      %v1061 = vpack.c.b16 %v1046, %v1045
      %v1062 = vpack.c.b16 %v1048, %v1047
      %v1063 = vpack.c.b16 %v1050, %v1049
      %v1064 = vpack.c.b16 %v1052, %v1051
      %v1065 = vpack.c.b16 %v1054, %v1053
      %v1066 = vpack.c.b16 %v1056, %v1055
      %v1067 = vpack.c.b16 %v1058, %v1057
      %v1068 = vpack.c.b16 %v1060, %v1059
      %1077 = vmatpush.bf16.msra.mxu0 %v1068
      %1078 = vmatpush.bf16.msra.mxu0 %v1067
      %1079 = vmatpush.bf16.msra.mxu0 %v1066
      %1080 = vmatpush.bf16.msra.mxu0 %v1065
      %1081 = vmatpush.bf16.msra.mxu0 %v1064
      %1082 = vmatpush.bf16.msra.mxu0 %v1063
      %1083 = vmatpush.bf16.msra.mxu0 %v1062
      %1084 = vmatpush.bf16.msra.mxu0 %v1061
      %1085 = vmatmul.bf16.gmra.mxu0 %v1027
      %v1086 = vpop.f32.mrf.mxu0
      %v1087 = vadd.f32 0.0, %v1086
      %v1088 = vpop.f32.mrf.mxu0
      %v1089 = vadd.f32 0.0, %v1088
      %1090 = vdwg.mxu0
      %v1091 = vadd.f32 %v994, %v1087
      %v1092 = vadd.f32 %v995, %v1089
      %s1093 = scalar_lea.vmem %s3, 512
      %v1094 = vld [vmem:[%s1093] sm:$0xf]
      %v1095 = vld [vmem:[%s1093 + $0x4] sm:$0xf]
      %v1096 = vld [vmem:[%s1093 + $0x8] sm:$0xf]
      %v1097 = vld [vmem:[%s1093 + $0xc] sm:$0xf]
      %v1098 = vld [vmem:[%s1093 + $0x10] sm:$0xf]
      %v1099 = vld [vmem:[%s1093 + $0x14] sm:$0xf]
      %v1100 = vld [vmem:[%s1093 + $0x18] sm:$0xf]
      %v1101 = vld [vmem:[%s1093 + $0x1c] sm:$0xf]
      %v1102 = vld [vmem:[%s1093 + $0x20] sm:$0xf]
      %v1103 = vld [vmem:[%s1093 + $0x24] sm:$0xf]
      %v1104 = vld [vmem:[%s1093 + $0x28] sm:$0xf]
      %v1105 = vld [vmem:[%s1093 + $0x2c] sm:$0xf]
      %v1106 = vld [vmem:[%s1093 + $0x30] sm:$0xf]
      %v1107 = vld [vmem:[%s1093 + $0x34] sm:$0xf]
      %v1108 = vld [vmem:[%s1093 + $0x38] sm:$0xf]
      %v1109 = vld [vmem:[%s1093 + $0x3c] sm:$0xf]
      %v1110 = vrot.slane %v930, 1
      %v1111 = vrot.slane %v1015, 1
      %v1112 = vsel %vm571, %v1110, %v1111
      %v1130 = vunpack.c.l.b16 %v1094
      %v1131 = vunpack.c.l.b16 %v1095
      %v1132 = vunpack.c.l.b16 %v1096
      %v1133 = vunpack.c.l.b16 %v1097
      %v1134 = vunpack.c.l.b16 %v1098
      %v1135 = vunpack.c.l.b16 %v1099
      %v1136 = vunpack.c.l.b16 %v1100
      %v1137 = vunpack.c.l.b16 %v1101
      %v1138 = vunpack.c.l.b16 %v1102
      %v1139 = vunpack.c.l.b16 %v1103
      %v1140 = vunpack.c.l.b16 %v1104
      %v1141 = vunpack.c.l.b16 %v1105
      %v1142 = vunpack.c.l.b16 %v1106
      %v1143 = vunpack.c.l.b16 %v1107
      %v1144 = vunpack.c.l.b16 %v1108
      %v1145 = vunpack.c.l.b16 %v1109
      %v1146 = vpack.c.b16 %v1131, %v1130
      %v1147 = vpack.c.b16 %v1133, %v1132
      %v1148 = vpack.c.b16 %v1135, %v1134
      %v1149 = vpack.c.b16 %v1137, %v1136
      %v1150 = vpack.c.b16 %v1139, %v1138
      %v1151 = vpack.c.b16 %v1141, %v1140
      %v1152 = vpack.c.b16 %v1143, %v1142
      %v1153 = vpack.c.b16 %v1145, %v1144
      %1162 = vmatpush.bf16.msra.mxu0 %v1153
      %1163 = vmatpush.bf16.msra.mxu0 %v1152
      %1164 = vmatpush.bf16.msra.mxu0 %v1151
      %1165 = vmatpush.bf16.msra.mxu0 %v1150
      %1166 = vmatpush.bf16.msra.mxu0 %v1149
      %1167 = vmatpush.bf16.msra.mxu0 %v1148
      %1168 = vmatpush.bf16.msra.mxu0 %v1147
      %1169 = vmatpush.bf16.msra.mxu0 %v1146
      %1170 = vmatmul.bf16.gmra.mxu0 %v1112
      %v1171 = vpop.f32.mrf.mxu0
      %v1172 = vadd.f32 0.0, %v1171
      %v1173 = vpop.f32.mrf.mxu0
      %v1174 = vadd.f32 0.0, %v1173
      %1175 = vdwg.mxu0
      %v1176 = vadd.f32 %v1091, %v1172
      %v1177 = vadd.f32 %v1092, %v1174
      %1178 = vst [vmem:[%s364] sm:$0xff] %v1176
      %1179 = vst [vmem:[%s364 + $0x8] sm:$0xff] %v1177
      %p1180 = scmp.eq.s32.totalorder %s22, 0
      %p1181 = scmp.eq.s32.totalorder %s23, 0
      %p1182 = pnand %p1180, %p1181
      %p1183 = pneg %p1182
      // Predicated region
      $region37: #{out_conv_forward.2} parent=35 // pred_check
        _
      $region38: #{out_conv_forward.2} parent=35 // pred_check_branch
        %1185 = sbr.rel (%p1182) target = $region40
      $region39: #{out_conv_forward.2} parent=35 // pred_region
        %1186 = vst [vmem:[%s5] sm:$0x1] 0.0
        %1187 = vst [vmem:[%s6] sm:$0x1] 0.0
      $region40: #{out_conv_forward.2} parent=35 // pred_fallthru
        _
      %v1188 = vld [vmem:[%s5] sm:$0x1]
      %v1189 = vadd.f32 %v1176, %v1177
      %v1190 = vrot.slane %v1189, 4
      %v1191 = vadd.f32 %v1189, %v1190
      %v1192 = vrot.slane %v1191, 2
      %v1193 = vadd.f32 %v1191, %v1192
      %v1194 = vrot.slane %v1193, 1
      %v1195 = vadd.f32 %v1193, %v1194
      %v1196 = vadd.f32 %v1188, %v1195
      %1197 = vst [vmem:[%s5] sm:$0x1] %v1196
      %v1198 = vld [vmem:[%s6] sm:$0x1]
      %v1199 = vmul.f32 %v1176, %v1176
      %v1200 = vmul.f32 %v1177, %v1177
      %v1201 = vadd.f32 %v1199, %v1200
      %v1202 = vrot.slane %v1201, 4
      %v1203 = vadd.f32 %v1201, %v1202
      %v1204 = vrot.slane %v1203, 2
      %v1205 = vadd.f32 %v1203, %v1204
      %v1206 = vrot.slane %v1205, 1
      %v1207 = vadd.f32 %v1205, %v1206
      %v1208 = vadd.f32 %v1198, %v1207
      %1209 = vst [vmem:[%s6] sm:$0x1] %v1208
      %p1210 = scmp.lt.s32.totalorder %s22, 1
      %s1211 = scalar_select %p1210, %s22, 1
      %p1212 = scmp.lt.s32.totalorder %s23, 15
      %s1213 = scalar_select %p1212, %s23, 15
      %s1214 = smul.addr %s1213, 2
      %s1215 = smul.addr %s1211, 32
      %s1216 = sadd.s32 %s1214, %s1215
      %s1217 = smul.addr %s1216, 8
      %s1218 = scalar_lea.vmem %s4, %s1217
      // Predicated region
      $region41: #{out_conv_forward.2} parent=35 // pred_check
        %p1219 = pneg %p159
      $region42: #{out_conv_forward.2} parent=35 // pred_check_branch
        %1221 = sbr.rel (%p1219) target = $region44
      $region43: #{out_conv_forward.2} parent=35 // pred_region
        _
      $region44: #{out_conv_forward.2} parent=35 // pred_fallthru
        _
      // Predicated region
      $region45: #{out_conv_forward.2} parent=35 // pred_check
        %p1222 = pneg %p180
      $region46: #{out_conv_forward.2} parent=35 // pred_check_branch
        %1224 = sbr.rel (%p1222) target = $region48
      $region47: #{out_conv_forward.2} parent=35 // pred_region
        _
      $region48: #{out_conv_forward.2} parent=35 // pred_fallthru
        _
      // Predicated region
      $region49: #{out_conv_forward.2} parent=35 // pred_check
        %p1225 = pneg %p201
      $region50: #{out_conv_forward.2} parent=35 // pred_check_branch
        %1227 = sbr.rel (%p1225) target = $region52
      $region51: #{out_conv_forward.2} parent=35 // pred_region
        _
      $region52: #{out_conv_forward.2} parent=35 // pred_fallthru
        _
      // Predicated region
      $region53: #{out_conv_forward.2} parent=35 // pred_check
        %p1228 = pneg %p180
      $region54: #{out_conv_forward.2} parent=35 // pred_check_branch
        %1230 = sbr.rel (%p1228) target = $region56
      $region55: #{out_conv_forward.2} parent=35 // pred_region
        _
      $region56: #{out_conv_forward.2} parent=35 // pred_fallthru
        _
      // Predicated region
      $region57: #{out_conv_forward.2} parent=35 // pred_check
        %p1231 = pneg %p201
      $region58: #{out_conv_forward.2} parent=35 // pred_check_branch
        %1233 = sbr.rel (%p1231) target = $region60
      $region59: #{out_conv_forward.2} parent=35 // pred_region
        _
      $region60: #{out_conv_forward.2} parent=35 // pred_fallthru
        _
    $region36: #{out_conv_forward.2} parent=5 // pred_fallthru
      _
    %p1234 = scmp.le.s32.totalorder 2, %s13
    // Predicated region
    $region61: #{out_conv_forward.2} parent=5 // pred_check
      %p1235 = pneg %p1234
    $region62: #{out_conv_forward.2} parent=5 // pred_check_branch
      %1237 = sbr.rel (%p1235) target = $region64
    $region63: #{out_conv_forward.2} parent=5 // pred_region
      %s1238 = ssub.s32 %s13, 2
      // Predicated region
      $region65: #{out_conv_forward.2} parent=63 // pred_check
        %p1239 = pneg %p165
      $region66: #{out_conv_forward.2} parent=63 // pred_check_branch
        %1241 = sbr.rel (%p1239) target = $region68
      $region67: #{out_conv_forward.2} parent=63 // pred_region
        %p1242 = scmp.lt.s32.totalorder %s24, 1
        %s1243 = scalar_select %p1242, %s24, 1
        %p1244 = scmp.lt.s32.totalorder %s25, 15
        %s1245 = scalar_select %p1244, %s25, 15
        %s1246 = smul.addr %s1245, 2
        %s1247 = smul.addr %s1243, 32
        %s1248 = sadd.s32 %s1246, %s1247
        %s1249 = smul.addr %s1248, 8
        %s1250 = scalar_lea.vmem %s4, %s1249
      $region68: #{out_conv_forward.2} parent=63 // pred_fallthru
        _
    $region64: #{out_conv_forward.2} parent=5 // pred_fallthru
      _
  $region6: #{out_conv_forward.2} parent=0 // loop_footer
    %s17 = sadd.s32 1, %s13
  $region7: #{out_conv_forward.2} parent=0 // loop_footer_branch
    %12 = sbr.rel target = $region3
  $region8: #{out_conv_forward.2} parent=0 // loop_exit
    _

</llo_original>
